<compile_context>
chip_gen: v7x
topology: tpu7x:2x2x1
jax: 0.10.0
libtpu: 0.0.40
codegen_flags: <defaults>
</compile_context>

<pallas_src>
import functools

import jax
import jax.numpy as jnp
from jax.experimental import pallas as pl
from jax.experimental.pallas import tpu as pltpu

# --------------------------- model config (small) ----------------------------
PLANES = 16          # C
HEAD_NUM = 2         # H  -> head_dim D = 8
PATCH_SIZE = 7       # N = patch_size**2 = 49
BATCH = 2


# ============================ fused MHSA kernel ===============================

def _mhsa_kernel(*refs, head_num, scale, qkv_bias, relative):
    it = iter(refs)
    x_ref = next(it)                      # (1, N, C)
    qkv_w_ref = next(it)                  # (C, 3C)
    qkv_b_ref = next(it) if qkv_bias else None      # (1, 3C)
    proj_w_ref = next(it)                 # (C, C)
    proj_b_ref = next(it)                 # (1, C)
    bias_ref = next(it) if relative else None       # (H, N, N)
    o_ref = next(it)                      # (1, N, C)

    x = x_ref[0]                          # (N, C), stays in VMEM/vregs
    N, C = x.shape
    D = C // head_num

    # QKV projection for all heads at once: (N, C) @ (C, 3C) -> (N, 3C)
    qkv = jnp.dot(x, qkv_w_ref[...], preferred_element_type=jnp.float32)
    if qkv_bias:
        qkv = qkv + qkv_b_ref[...]

    proj_w = proj_w_ref[...]              # (C, C)

    # Per-head attention; head outputs are merged directly into the projection
    # (sum_h o_h @ W_proj[hD:(h+1)D, :]) so the result is written lane-dense as
    # (N, C) with no concat / transpose round-trip.
    acc = None
    for h in range(head_num):
        q = qkv[:, h * D:(h + 1) * D] * scale          # (N, D)
        k = qkv[:, C + h * D:C + (h + 1) * D]          # (N, D)
        v = qkv[:, 2 * C + h * D:2 * C + (h + 1) * D]  # (N, D)

        s = jax.lax.dot_general(q, k, (((1,), (1,)), ((), ())),
                                preferred_element_type=jnp.float32)   # (N, N)
        if relative:
            s = s + bias_ref[h]

        # numerically-stable softmax; reciprocal on the EUP (its own VLIW slot)
        s = s - jnp.max(s, axis=-1, keepdims=True)
        e = jnp.exp(s)
        p = e * pl.reciprocal(jnp.sum(e, axis=-1, keepdims=True), approx=True)
        # attn_drop: identity at inference

        o_h = jnp.dot(p, v, preferred_element_type=jnp.float32)              # (N, D)
        contrib = jnp.dot(o_h, proj_w[h * D:(h + 1) * D, :],
                          preferred_element_type=jnp.float32)                # (N, C)
        acc = contrib if acc is None else acc + contrib

    # proj bias; proj_drop: identity at inference
    o_ref[0] = (acc + proj_b_ref[...]).astype(o_ref.dtype)


def mhsa_forward(x, params, *, head_num=HEAD_NUM, qkv_bias=True, relative=False):
    """x: (B, N, C) float32 -> (B, N, C) float32."""
    B, N, C = x.shape
    D = C // head_num
    scale = D ** (-0.5)

    inputs = [x, params["qkv_w"]]
    in_specs = [pl.BlockSpec((1, N, C), lambda b: (b, 0, 0)),
                pl.BlockSpec((C, 3 * C), lambda b: (0, 0))]
    if qkv_bias:
        inputs.append(params["qkv_b"].reshape(1, 3 * C))
        in_specs.append(pl.BlockSpec((1, 3 * C), lambda b: (0, 0)))

    inputs += [params["proj_w"], params["proj_b"].reshape(1, C)]
    in_specs += [pl.BlockSpec((C, C), lambda b: (0, 0)),
                 pl.BlockSpec((1, C), lambda b: (0, 0))]

    if relative:
        # one-time parameter gather (glue, plain JAX):
        # table[(2P-1)^2, H] indexed by rel_index (N, N) -> bias (H, N, N)
        idx = params["rel_index"].reshape(-1)
        bias = jnp.take(params["rel_table"], idx, axis=0)
        bias = bias.reshape(N, N, head_num).transpose(2, 0, 1)
        inputs.append(bias)
        in_specs.append(pl.BlockSpec((head_num, N, N), lambda b: (0, 0, 0)))

    kernel = functools.partial(_mhsa_kernel, head_num=head_num, scale=scale,
                               qkv_bias=qkv_bias, relative=relative)
    return pl.pallas_call(
        kernel,
        grid=(B,),
        in_specs=in_specs,
        out_specs=pl.BlockSpec((1, N, C), lambda b: (b, 0, 0)),
        out_shape=jax.ShapeDtypeStruct((B, N, C), jnp.float32),
        compiler_params=pltpu.CompilerParams(
            dimension_semantics=("parallel",)),
    )(*inputs)


# ============================ reference / params ==============================

def make_relative_position_index(patch_size):
    # mirrors the PyTorch buffer construction in MHSA.__init__
    coords_h = jnp.arange(patch_size)
    coords_w = jnp.arange(patch_size)
    coords = jnp.stack(jnp.meshgrid(coords_h, coords_w, indexing="ij"))   # (2, P, P)
    coords_flatten = coords.reshape(2, -1)                                # (2, N)
    rel = coords_flatten[:, :, None] - coords_flatten[:, None, :]         # (2, N, N)
    rel = rel.transpose(1, 2, 0)                                          # (N, N, 2)
    r0 = (rel[..., 0] + patch_size - 1) * (2 * patch_size - 1)
    r1 = rel[..., 1] + patch_size - 1
    return (r0 + r1).astype(jnp.int32)                                    # (N, N)


def mhsa_reference(x, params, *, head_num, qkv_bias, relative):
    # pure-JAX reference matching the PyTorch forward (eval mode: dropout = id)
    B, N, C = x.shape
    D = C // head_num
    scale = D ** (-0.5)
    qkv = x @ params["qkv_w"]
    if qkv_bias:
        qkv = qkv + params["qkv_b"]
    qkv = qkv.reshape(B, N, 3, head_num, D).transpose(2, 0, 3, 1, 4)      # (3,B,H,N,D)
    q, k, v = qkv[0] * scale, qkv[1], qkv[2]
    attn = jnp.einsum("bhnd,bhmd->bhnm", q, k)
    if relative:
        idx = params["rel_index"].reshape(-1)
        bias = jnp.take(params["rel_table"], idx, axis=0)
        bias = bias.reshape(N, N, head_num).transpose(2, 0, 1)
        attn = attn + bias[None]
    attn = jax.nn.softmax(attn, axis=-1)
    out = jnp.einsum("bhnm,bhmd->bhnd", attn, v)
    out = out.transpose(0, 2, 1, 3).reshape(B, N, C)
    return out @ params["proj_w"] + params["proj_b"]


def init_params(key):
    C, H, P = PLANES, HEAD_NUM, PATCH_SIZE
    ks = jax.random.split(key, 5)
    return dict(
        qkv_w=jax.random.normal(ks[0], (C, 3 * C), jnp.float32) * 0.02,
        qkv_b=jax.random.normal(ks[1], (3 * C,), jnp.float32) * 0.02,
        proj_w=jax.random.normal(ks[2], (C, C), jnp.float32) * 0.02,
        proj_b=jax.random.normal(ks[3], (C,), jnp.float32) * 0.02,
        rel_table=jax.random.normal(ks[4], ((2 * P - 1) ** 2, H), jnp.float32) * 0.02,
        rel_index=make_relative_position_index(P),
    )


# ================================== main ======================================

if __name__ == "__main__":
    key = jax.random.PRNGKey(0)
    pkey, xkey = jax.random.split(key)
    params = init_params(pkey)

    B, N, C = BATCH, PATCH_SIZE * PATCH_SIZE, PLANES
    x = jax.random.normal(xkey, (B, N, C), jnp.float32)

    # full path: qkv_bias=True, relative=True
    fwd_rel = jax.jit(functools.partial(
        mhsa_forward, head_num=HEAD_NUM, qkv_bias=True, relative=True))
    out = jax.block_until_ready(fwd_rel(x, params))
    ref = mhsa_reference(x, params, head_num=HEAD_NUM, qkv_bias=True, relative=True)
    assert out.shape == (B, N, C), out.shape
    assert bool(jnp.all(jnp.isfinite(out)))
    assert bool(jnp.allclose(out, ref, atol=1e-3, rtol=1e-2)), \
        float(jnp.max(jnp.abs(out - ref)))

    # fast path: no qkv bias, no relative bias (no zero-filled DMAs)
    fwd_plain = jax.jit(functools.partial(
        mhsa_forward, head_num=HEAD_NUM, qkv_bias=False, relative=False))
    out2 = jax.block_until_ready(fwd_plain(x, params))
    ref2 = mhsa_reference(x, params, head_num=HEAD_NUM, qkv_bias=False, relative=False)
    assert bool(jnp.allclose(out2, ref2, atol=1e-3, rtol=1e-2)), \
        float(jnp.max(jnp.abs(out2 - ref2)))

    print("KERNEL_OK")
</pallas_src>

<mosaic_0001>
module attributes {stable_mosaic.version = 11 : i64} {
  func.func @_mhsa_kernel(%arg0: i32, %arg1: memref<1x49x16xf32, #tpu.memory_space<vmem>>, %arg2: memref<16x48xf32, #tpu.memory_space<vmem>>, %arg3: memref<1x48xf32, #tpu.memory_space<vmem>>, %arg4: memref<16x16xf32, #tpu.memory_space<vmem>>, %arg5: memref<1x16xf32, #tpu.memory_space<vmem>>, %arg6: memref<2x49x49xf32, #tpu.memory_space<vmem>>, %arg7: memref<1x49x16xf32, #tpu.memory_space<vmem>>) attributes {dimension_semantics = [#tpu.dimension_semantics<parallel>], iteration_bounds = array<i64: 2>, scalar_prefetch = 0 : i64, scratch_operands = 0 : i64, tpu.core_type = #tpu.core_type<tc>, window_params = [{transform_indices = @transform_0, window_bounds = array<i64: 1, 49, 16>}, {pipeline_mode = #tpu.pipeline_mode<synchronous>, transform_indices = @transform_1, window_bounds = array<i64: 16, 48>}, {pipeline_mode = #tpu.pipeline_mode<synchronous>, transform_indices = @transform_2, window_bounds = array<i64: 1, 48>}, {pipeline_mode = #tpu.pipeline_mode<synchronous>, transform_indices = @transform_3, window_bounds = array<i64: 16, 16>}, {pipeline_mode = #tpu.pipeline_mode<synchronous>, transform_indices = @transform_4, window_bounds = array<i64: 1, 16>}, {pipeline_mode = #tpu.pipeline_mode<synchronous>, transform_indices = @transform_5, window_bounds = array<i64: 2, 49, 49>}, {transform_indices = @transform_6, window_bounds = array<i64: 1, 49, 16>}]} {
    %c0 = arith.constant 0 : index
    %c0_0 = arith.constant 0 : index
    %c0_1 = arith.constant 0 : index
    %0 = vector.load %arg1[%c0, %c0_0, %c0_1] : memref<1x49x16xf32, #tpu.memory_space<vmem>>, vector<1x49x16xf32>
    %1 = vector.shape_cast %0 : vector<1x49x16xf32> to vector<49x16xf32>
    %c0_2 = arith.constant 0 : index
    %c0_3 = arith.constant 0 : index
    %2 = vector.load %arg2[%c0_2, %c0_3] : memref<16x48xf32, #tpu.memory_space<vmem>>, vector<16x48xf32>
    %cst = arith.constant dense<0.000000e+00> : vector<49x48xf32>
    %3 = tpu.matmul %1, %2, %cst {dimension_numbers = #tpu.dot_dimension_numbers<[1], [0], [0], [1], [0, 0, 1, 1], [], []>} : vector<49x16xf32>, vector<16x48xf32>, vector<49x48xf32> -> vector<49x48xf32>
    %c0_4 = arith.constant 0 : index
    %c0_5 = arith.constant 0 : index
    %4 = vector.load %arg3[%c0_4, %c0_5] : memref<1x48xf32, #tpu.memory_space<vmem>>, vector<1x48xf32>
    %5 = vector.broadcast %4 : vector<1x48xf32> to vector<49x48xf32>
    %6 = arith.addf %3, %5 : vector<49x48xf32>
    %c0_6 = arith.constant 0 : index
    %c0_7 = arith.constant 0 : index
    %7 = vector.load %arg4[%c0_6, %c0_7] : memref<16x16xf32, #tpu.memory_space<vmem>>, vector<16x16xf32>
    %8 = vector.extract_strided_slice %6 {offsets = [0, 0], sizes = [49, 8], strides = [1, 1]} : vector<49x48xf32> to vector<49x8xf32>
    %cst_8 = arith.constant 0.353553385 : f32
    %9 = vector.broadcast %cst_8 : f32 to vector<49x8xf32>
    %10 = arith.mulf %8, %9 : vector<49x8xf32>
    %11 = vector.extract_strided_slice %6 {offsets = [0, 16], sizes = [49, 8], strides = [1, 1]} : vector<49x48xf32> to vector<49x8xf32>
    %12 = vector.extract_strided_slice %6 {offsets = [0, 32], sizes = [49, 8], strides = [1, 1]} : vector<49x48xf32> to vector<49x8xf32>
    %cst_9 = arith.constant dense<0.000000e+00> : vector<49x49xf32>
    %13 = tpu.matmul %10, %11, %cst_9 {dimension_numbers = #tpu.dot_dimension_numbers<[1], [1], [0], [0], [0, 0, 1, 0], [], []>} : vector<49x8xf32>, vector<49x8xf32>, vector<49x49xf32> -> vector<49x49xf32>
    %c0_10 = arith.constant 0 : index
    %c0_11 = arith.constant 0 : index
    %c0_12 = arith.constant 0 : index
    %14 = vector.load %arg6[%c0_10, %c0_11, %c0_12] : memref<2x49x49xf32, #tpu.memory_space<vmem>>, vector<1x49x49xf32>
    %15 = vector.shape_cast %14 : vector<1x49x49xf32> to vector<49x49xf32>
    %16 = arith.addf %13, %15 : vector<49x49xf32>
    %cst_13 = arith.constant dense<0xFF800000> : vector<49xf32>
    %17 = vector.multi_reduction <maximumf>, %16, %cst_13 [1] : vector<49x49xf32> to vector<49xf32>
    %18 = vector.shape_cast %17 : vector<49xf32> to vector<49x1xf32>
    %19 = vector.broadcast %18 : vector<49x1xf32> to vector<49x49xf32>
    %20 = arith.subf %16, %19 : vector<49x49xf32>
    %21 = math.exp %20 : vector<49x49xf32>
    %cst_14 = arith.constant dense<0.000000e+00> : vector<49xf32>
    %22 = vector.multi_reduction <add>, %21, %cst_14 [1] : vector<49x49xf32> to vector<49xf32>
    %23 = vector.shape_cast %22 : vector<49xf32> to vector<49x1xf32>
    %24 = tpu.reciprocal %23 {approx = true} : vector<49x1xf32> -> vector<49x1xf32>
    %25 = vector.broadcast %24 : vector<49x1xf32> to vector<49x49xf32>
    %26 = arith.mulf %21, %25 : vector<49x49xf32>
    %cst_15 = arith.constant dense<0.000000e+00> : vector<49x8xf32>
    %27 = tpu.matmul %26, %12, %cst_15 {dimension_numbers = #tpu.dot_dimension_numbers<[1], [0], [0], [1], [0, 0, 1, 1], [], []>} : vector<49x49xf32>, vector<49x8xf32>, vector<49x8xf32> -> vector<49x8xf32>
    %28 = vector.extract_strided_slice %7 {offsets = [0, 0], sizes = [8, 16], strides = [1, 1]} : vector<16x16xf32> to vector<8x16xf32>
    %cst_16 = arith.constant dense<0.000000e+00> : vector<49x16xf32>
    %29 = tpu.matmul %27, %28, %cst_16 {dimension_numbers = #tpu.dot_dimension_numbers<[1], [0], [0], [1], [0, 0, 1, 1], [], []>} : vector<49x8xf32>, vector<8x16xf32>, vector<49x16xf32> -> vector<49x16xf32>
    %30 = vector.extract_strided_slice %6 {offsets = [0, 8], sizes = [49, 8], strides = [1, 1]} : vector<49x48xf32> to vector<49x8xf32>
    %cst_17 = arith.constant 0.353553385 : f32
    %31 = vector.broadcast %cst_17 : f32 to vector<49x8xf32>
    %32 = arith.mulf %30, %31 : vector<49x8xf32>
    %33 = vector.extract_strided_slice %6 {offsets = [0, 24], sizes = [49, 8], strides = [1, 1]} : vector<49x48xf32> to vector<49x8xf32>
    %34 = vector.extract_strided_slice %6 {offsets = [0, 40], sizes = [49, 8], strides = [1, 1]} : vector<49x48xf32> to vector<49x8xf32>
    %cst_18 = arith.constant dense<0.000000e+00> : vector<49x49xf32>
    %35 = tpu.matmul %32, %33, %cst_18 {dimension_numbers = #tpu.dot_dimension_numbers<[1], [1], [0], [0], [0, 0, 1, 0], [], []>} : vector<49x8xf32>, vector<49x8xf32>, vector<49x49xf32> -> vector<49x49xf32>
    %c1 = arith.constant 1 : index
    %c0_19 = arith.constant 0 : index
    %c0_20 = arith.constant 0 : index
    %36 = vector.load %arg6[%c1, %c0_19, %c0_20] : memref<2x49x49xf32, #tpu.memory_space<vmem>>, vector<1x49x49xf32>
    %37 = vector.shape_cast %36 : vector<1x49x49xf32> to vector<49x49xf32>
    %38 = arith.addf %35, %37 : vector<49x49xf32>
    %cst_21 = arith.constant dense<0xFF800000> : vector<49xf32>
    %39 = vector.multi_reduction <maximumf>, %38, %cst_21 [1] : vector<49x49xf32> to vector<49xf32>
    %40 = vector.shape_cast %39 : vector<49xf32> to vector<49x1xf32>
    %41 = vector.broadcast %40 : vector<49x1xf32> to vector<49x49xf32>
    %42 = arith.subf %38, %41 : vector<49x49xf32>
    %43 = math.exp %42 : vector<49x49xf32>
    %cst_22 = arith.constant dense<0.000000e+00> : vector<49xf32>
    %44 = vector.multi_reduction <add>, %43, %cst_22 [1] : vector<49x49xf32> to vector<49xf32>
    %45 = vector.shape_cast %44 : vector<49xf32> to vector<49x1xf32>
    %46 = tpu.reciprocal %45 {approx = true} : vector<49x1xf32> -> vector<49x1xf32>
    %47 = vector.broadcast %46 : vector<49x1xf32> to vector<49x49xf32>
    %48 = arith.mulf %43, %47 : vector<49x49xf32>
    %cst_23 = arith.constant dense<0.000000e+00> : vector<49x8xf32>
    %49 = tpu.matmul %48, %34, %cst_23 {dimension_numbers = #tpu.dot_dimension_numbers<[1], [0], [0], [1], [0, 0, 1, 1], [], []>} : vector<49x49xf32>, vector<49x8xf32>, vector<49x8xf32> -> vector<49x8xf32>
    %50 = vector.extract_strided_slice %7 {offsets = [8, 0], sizes = [8, 16], strides = [1, 1]} : vector<16x16xf32> to vector<8x16xf32>
    %cst_24 = arith.constant dense<0.000000e+00> : vector<49x16xf32>
    %51 = tpu.matmul %49, %50, %cst_24 {dimension_numbers = #tpu.dot_dimension_numbers<[1], [0], [0], [1], [0, 0, 1, 1], [], []>} : vector<49x8xf32>, vector<8x16xf32>, vector<49x16xf32> -> vector<49x16xf32>
    %52 = arith.addf %29, %51 : vector<49x16xf32>
    %c0_25 = arith.constant 0 : index
    %c0_26 = arith.constant 0 : index
    %53 = vector.load %arg5[%c0_25, %c0_26] : memref<1x16xf32, #tpu.memory_space<vmem>>, vector<1x16xf32>
    %54 = vector.broadcast %53 : vector<1x16xf32> to vector<49x16xf32>
    %55 = arith.addf %52, %54 : vector<49x16xf32>
    %c0_27 = arith.constant 0 : index
    %c0_28 = arith.constant 0 : index
    %c0_29 = arith.constant 0 : index
    %56 = vector.load %arg7[%c0_27, %c0_28, %c0_29] : memref<1x49x16xf32, #tpu.memory_space<vmem>>, vector<1x49x16xf32>
    %57 = vector.shape_cast %56 : vector<1x49x16xf32> to vector<49x16xf32>
    %58 = vector.shape_cast %55 : vector<49x16xf32> to vector<1x49x16xf32>
    tpu.vector_store %arg7[%c0_27, %c0_28, %c0_29], %58 {strides = array<i32>} : memref<1x49x16xf32, #tpu.memory_space<vmem>>, vector<1x49x16xf32>,
    return
  }
  func.func @transform_0(%arg0: i32) -> (i32, i32, i32) {
    %c0_i32 = arith.constant 0 : i32
    %c0_i32_0 = arith.constant 0 : i32
    %c0_i32_1 = arith.constant 0 : i32
    return %arg0, %c0_i32, %c0_i32_0 : i32, i32, i32
  }
  func.func @transform_1(%arg0: i32) -> (i32, i32) {
    %c0_i32 = arith.constant 0 : i32
    %c0_i32_0 = arith.constant 0 : i32
    %c0_i32_1 = arith.constant 0 : i32
    return %c0_i32, %c0_i32_0 : i32, i32
  }
  func.func @transform_2(%arg0: i32) -> (i32, i32) {
    %c0_i32 = arith.constant 0 : i32
    %c0_i32_0 = arith.constant 0 : i32
    %c0_i32_1 = arith.constant 0 : i32
    return %c0_i32, %c0_i32_0 : i32, i32
  }
  func.func @transform_3(%arg0: i32) -> (i32, i32) {
    %c0_i32 = arith.constant 0 : i32
    %c0_i32_0 = arith.constant 0 : i32
    %c0_i32_1 = arith.constant 0 : i32
    return %c0_i32, %c0_i32_0 : i32, i32
  }
  func.func @transform_4(%arg0: i32) -> (i32, i32) {
    %c0_i32 = arith.constant 0 : i32
    %c0_i32_0 = arith.constant 0 : i32
    %c0_i32_1 = arith.constant 0 : i32
    return %c0_i32, %c0_i32_0 : i32, i32
  }
  func.func @transform_5(%arg0: i32) -> (i32, i32, i32) {
    %c0_i32 = arith.constant 0 : i32
    %c0_i32_0 = arith.constant 0 : i32
    %c0_i32_1 = arith.constant 0 : i32
    %c0_i32_2 = arith.constant 0 : i32
    return %c0_i32, %c0_i32_0, %c0_i32_1 : i32, i32, i32
  }
  func.func @transform_6(%arg0: i32) -> (i32, i32, i32) {
    %c0_i32 = arith.constant 0 : i32
    %c0_i32_0 = arith.constant 0 : i32
    %c0_i32_1 = arith.constant 0 : i32
    return %arg0, %c0_i32, %c0_i32_0 : i32, i32, i32
  }
}

</mosaic_0001>

<llo_original>
// kernel: mhsa_forward.1
$region0: #{mhsa_forward.1}
  #allocation0 [shape = 'u32[]', space=smem, size = 0x4, offset = 0x4, fixed_abs, tag = 'smem constant byte address 0x4 - core index']
  #allocation1 [shape = 'u32[144,128]{1,0:T(1,128)}', space=vmem, size = 0x12000, scoped, tag = 'internal scratch']
  %s0 = inlined_call_operand.vmem [shape: f32[2,49,16], index: 0, kind: input, shape index: {}]
  %s1 = inlined_call_operand.vmem [shape: f32[16,48], index: 1, kind: input, shape index: {}]
  %s2 = inlined_call_operand.vmem [shape: f32[1,48], index: 2, kind: input, shape index: {}]
  %s3 = inlined_call_operand.vmem [shape: f32[16,16], index: 3, kind: input, shape index: {}]
  %s4 = inlined_call_operand.vmem [shape: f32[1,16], index: 4, kind: input, shape index: {}]
  %s5 = inlined_call_operand.vmem [shape: f32[2,49,49], index: 5, kind: input, shape index: {}]
  %s6 = inlined_call_operand.vmem [shape: f32[2,49,16], index: 6, kind: output, shape index: {}]
  %s7 = sld [smem:[#allocation0]]
  $region57: #{mhsa_forward.1} parent=0
    _
  %s9 = ssub.s32 1, %s7
  %s10 = scalar_select 0, %s9, %s7
  loop: start=0, step=1, limit=4
  $region2: #{mhsa_forward.1} parent=0 // loop_pre_header
    _
  $region3: #{mhsa_forward.1} parent=0 // loop_header
    %s12 = sphi 0, %s16
    %p13 = scmp.ge.s32.totalorder %s12, 4
    %s22 = sphi 0, %s24
    %s25 = sphi 0, %s22
    %s26 = sphi 0, %s25
    %s42 = sphi 0, %s26
    %s46 = sphi 0, %s46
    %s48 = sphi 0, %s46
    %s49 = sphi 0, %s48
    %s63 = sphi 0, %s49
    %s67 = sphi 0, %s67
    %s69 = sphi 0, %s67
    %s70 = sphi 0, %s69
    %s84 = sphi 0, %s70
    %s88 = sphi 0, %s88
    %s90 = sphi 0, %s88
    %s91 = sphi 0, %s90
    %s105 = sphi 0, %s91
    %s109 = sphi 0, %s109
    %s111 = sphi 0, %s109
    %s112 = sphi 0, %s111
    %s126 = sphi 0, %s112
    %s130 = sphi 0, %s130
    %s132 = sphi 0, %s130
    %s133 = sphi 0, %s132
    %s147 = sphi 0, %s133
    %s153 = sphi 0, %s155
    %s156 = sphi 0, %s153
    %s157 = sphi 0, %s156
    %s173 = sphi 0, %s157
  $region4: #{mhsa_forward.1} parent=0 // loop_header_branch
    %15 = sbr.rel (%p13) target = $region8
  $region5: #{mhsa_forward.1} parent=0 // loop_body
    %s17 = ssub.s32 %s12, 1
    %s18 = ssub.s32 %s12, 2
    %s19 = sadd.s32 %s12, 1
    %s20 = ssub.s32 %s12, %s19
    %p21 = scmp.eq.s32.totalorder %s20, 0
    %s23 = sadd.s32 %s22, 1
    %s24 = scalar_select %p21, %s22, %s23
    %p27 = pneg %p21
    %p28 = scmp.eq.s32.totalorder %s12, 1
    %p29 = por %p27, %p28
    %p30 = scmp.ne.s32.totalorder %s22, %s25
    %p31 = scmp.eq.s32.totalorder %s12, 0
    %p32 = por %p30, %p31
    %p33 = scmp.ne.s32.totalorder %s22, %s25
    %p34 = scmp.eq.s32.totalorder %s17, 1
    %p35 = por %p33, %p34
    %p36 = scmp.ne.s32.totalorder %s25, %s26
    %p37 = scmp.eq.s32.totalorder %s17, 0
    %p38 = por %p36, %p37
    %p39 = scmp.ne.s32.totalorder %s25, %s26
    %p40 = scmp.eq.s32.totalorder %s18, 1
    %p41 = por %p39, %p40
    %p43 = scmp.ne.s32.totalorder %s26, %s42
    %p44 = scmp.eq.s32.totalorder %s18, 0
    %p45 = por %p43, %p44
    %s47 = sadd.s32 %s46, 1
    %p50 = scmp.eq.s32.totalorder %s12, 1
    %p51 = scmp.ne.s32.totalorder %s46, %s48
    %p52 = scmp.eq.s32.totalorder %s12, 0
    %p53 = por %p51, %p52
    %p54 = scmp.ne.s32.totalorder %s46, %s48
    %p55 = scmp.eq.s32.totalorder %s17, 1
    %p56 = por %p54, %p55
    %p57 = scmp.ne.s32.totalorder %s48, %s49
    %p58 = scmp.eq.s32.totalorder %s17, 0
    %p59 = por %p57, %p58
    %p60 = scmp.ne.s32.totalorder %s48, %s49
    %p61 = scmp.eq.s32.totalorder %s18, 1
    %p62 = por %p60, %p61
    %p64 = scmp.ne.s32.totalorder %s49, %s63
    %p65 = scmp.eq.s32.totalorder %s18, 0
    %p66 = por %p64, %p65
    %s68 = sadd.s32 %s67, 1
    %p71 = scmp.eq.s32.totalorder %s12, 1
    %p72 = scmp.ne.s32.totalorder %s67, %s69
    %p73 = scmp.eq.s32.totalorder %s12, 0
    %p74 = por %p72, %p73
    %p75 = scmp.ne.s32.totalorder %s67, %s69
    %p76 = scmp.eq.s32.totalorder %s17, 1
    %p77 = por %p75, %p76
    %p78 = scmp.ne.s32.totalorder %s69, %s70
    %p79 = scmp.eq.s32.totalorder %s17, 0
    %p80 = por %p78, %p79
    %p81 = scmp.ne.s32.totalorder %s69, %s70
    %p82 = scmp.eq.s32.totalorder %s18, 1
    %p83 = por %p81, %p82
    %p85 = scmp.ne.s32.totalorder %s70, %s84
    %p86 = scmp.eq.s32.totalorder %s18, 0
    %p87 = por %p85, %p86
    %s89 = sadd.s32 %s88, 1
    %p92 = scmp.eq.s32.totalorder %s12, 1
    %p93 = scmp.ne.s32.totalorder %s88, %s90
    %p94 = scmp.eq.s32.totalorder %s12, 0
    %p95 = por %p93, %p94
    %p96 = scmp.ne.s32.totalorder %s88, %s90
    %p97 = scmp.eq.s32.totalorder %s17, 1
    %p98 = por %p96, %p97
    %p99 = scmp.ne.s32.totalorder %s90, %s91
    %p100 = scmp.eq.s32.totalorder %s17, 0
    %p101 = por %p99, %p100
    %p102 = scmp.ne.s32.totalorder %s90, %s91
    %p103 = scmp.eq.s32.totalorder %s18, 1
    %p104 = por %p102, %p103
    %p106 = scmp.ne.s32.totalorder %s91, %s105
    %p107 = scmp.eq.s32.totalorder %s18, 0
    %p108 = por %p106, %p107
    %s110 = sadd.s32 %s109, 1
    %p113 = scmp.eq.s32.totalorder %s12, 1
    %p114 = scmp.ne.s32.totalorder %s109, %s111
    %p115 = scmp.eq.s32.totalorder %s12, 0
    %p116 = por %p114, %p115
    %p117 = scmp.ne.s32.totalorder %s109, %s111
    %p118 = scmp.eq.s32.totalorder %s17, 1
    %p119 = por %p117, %p118
    %p120 = scmp.ne.s32.totalorder %s111, %s112
    %p121 = scmp.eq.s32.totalorder %s17, 0
    %p122 = por %p120, %p121
    %p123 = scmp.ne.s32.totalorder %s111, %s112
    %p124 = scmp.eq.s32.totalorder %s18, 1
    %p125 = por %p123, %p124
    %p127 = scmp.ne.s32.totalorder %s112, %s126
    %p128 = scmp.eq.s32.totalorder %s18, 0
    %p129 = por %p127, %p128
    %s131 = sadd.s32 %s130, 1
    %p134 = scmp.eq.s32.totalorder %s12, 1
    %p135 = scmp.ne.s32.totalorder %s130, %s132
    %p136 = scmp.eq.s32.totalorder %s12, 0
    %p137 = por %p135, %p136
    %p138 = scmp.ne.s32.totalorder %s130, %s132
    %p139 = scmp.eq.s32.totalorder %s17, 1
    %p140 = por %p138, %p139
    %p141 = scmp.ne.s32.totalorder %s132, %s133
    %p142 = scmp.eq.s32.totalorder %s17, 0
    %p143 = por %p141, %p142
    %p144 = scmp.ne.s32.totalorder %s132, %s133
    %p145 = scmp.eq.s32.totalorder %s18, 1
    %p146 = por %p144, %p145
    %p148 = scmp.ne.s32.totalorder %s133, %s147
    %p149 = scmp.eq.s32.totalorder %s18, 0
    %p150 = por %p148, %p149
    %s151 = ssub.s32 %s12, %s19
    %p152 = scmp.eq.s32.totalorder %s151, 0
    %s154 = sadd.s32 %s153, 1
    %s155 = scalar_select %p152, %s153, %s154
    %p158 = pneg %p152
    %p159 = scmp.eq.s32.totalorder %s12, 1
    %p160 = por %p158, %p159
    %p161 = scmp.ne.s32.totalorder %s153, %s156
    %p162 = scmp.eq.s32.totalorder %s12, 0
    %p163 = por %p161, %p162
    %p164 = scmp.ne.s32.totalorder %s153, %s156
    %p165 = scmp.eq.s32.totalorder %s17, 1
    %p166 = por %p164, %p165
    %p167 = scmp.ne.s32.totalorder %s156, %s157
    %p168 = scmp.eq.s32.totalorder %s17, 0
    %p169 = por %p167, %p168
    %p170 = scmp.ne.s32.totalorder %s156, %s157
    %p171 = scmp.eq.s32.totalorder %s18, 1
    %p172 = por %p170, %p171
    %p174 = scmp.ne.s32.totalorder %s157, %s173
    %p175 = scmp.eq.s32.totalorder %s18, 0
    %p176 = por %p174, %p175
    %p177 = scmp.le.s32.totalorder 1, %s12
    %p178 = scmp.lt.s32.totalorder %s12, 3
    %p179 = pnand %p177, %p178
    %p180 = pneg %p179
    // Predicated region
    $region9: #{mhsa_forward.1} parent=5 // pred_check
      _
    $region10: #{mhsa_forward.1} parent=5 // pred_check_branch
      %182 = sbr.rel (%p179) target = $region12
    $region11: #{mhsa_forward.1} parent=5 // pred_region
      %s183 = ssub.s32 %s12, 1
      // Predicated region
      $region13: #{mhsa_forward.1} parent=11 // pred_check
        %p184 = pneg %p59
      $region14: #{mhsa_forward.1} parent=11 // pred_check_branch
        %186 = sbr.rel (%p184) target = $region16
      $region15: #{mhsa_forward.1} parent=11 // pred_region
        _
      $region16: #{mhsa_forward.1} parent=11 // pred_fallthru
        _
      // Predicated region
      $region17: #{mhsa_forward.1} parent=11 // pred_check
        %p187 = pneg %p80
      $region18: #{mhsa_forward.1} parent=11 // pred_check_branch
        %189 = sbr.rel (%p187) target = $region20
      $region19: #{mhsa_forward.1} parent=11 // pred_region
        _
      $region20: #{mhsa_forward.1} parent=11 // pred_fallthru
        _
      // Predicated region
      $region21: #{mhsa_forward.1} parent=11 // pred_check
        %p190 = pneg %p101
      $region22: #{mhsa_forward.1} parent=11 // pred_check_branch
        %192 = sbr.rel (%p190) target = $region24
      $region23: #{mhsa_forward.1} parent=11 // pred_region
        _
      $region24: #{mhsa_forward.1} parent=11 // pred_fallthru
        _
      // Predicated region
      $region25: #{mhsa_forward.1} parent=11 // pred_check
        %p193 = pneg %p122
      $region26: #{mhsa_forward.1} parent=11 // pred_check_branch
        %195 = sbr.rel (%p193) target = $region28
      $region27: #{mhsa_forward.1} parent=11 // pred_region
        _
      $region28: #{mhsa_forward.1} parent=11 // pred_fallthru
        _
      // Predicated region
      $region29: #{mhsa_forward.1} parent=11 // pred_check
        %p196 = pneg %p143
      $region30: #{mhsa_forward.1} parent=11 // pred_check_branch
        %198 = sbr.rel (%p196) target = $region32
      $region31: #{mhsa_forward.1} parent=11 // pred_region
        _
      $region32: #{mhsa_forward.1} parent=11 // pred_fallthru
        _
    $region12: #{mhsa_forward.1} parent=5 // pred_fallthru
      _
    %p199 = scmp.lt.s32.totalorder %s12, 2
    // Predicated region
    $region33: #{mhsa_forward.1} parent=5 // pred_check
      %p200 = pneg %p199
    $region34: #{mhsa_forward.1} parent=5 // pred_check_branch
      %202 = sbr.rel (%p200) target = $region36
    $region35: #{mhsa_forward.1} parent=5 // pred_region
      // Predicated region
      $region37: #{mhsa_forward.1} parent=35 // pred_check
        %p203 = pneg %p32
      $region38: #{mhsa_forward.1} parent=35 // pred_check_branch
        %205 = sbr.rel (%p203) target = $region40
      $region39: #{mhsa_forward.1} parent=35 // pred_region
        %p206 = scmp.lt.s32.totalorder %s12, 1
        %s207 = scalar_select %p206, %s12, 1
        %s208 = smul.addr %s207, 7
        %s209 = smul.addr %s208, 8
        %s210 = scalar_lea.vmem %s0, %s209
      $region40: #{mhsa_forward.1} parent=35 // pred_fallthru
        _
    $region36: #{mhsa_forward.1} parent=5 // pred_fallthru
      _
    %p211 = scmp.le.s32.totalorder 1, %s12
    %p212 = scmp.lt.s32.totalorder %s12, 3
    %p213 = pnand %p211, %p212
    %p214 = pneg %p213
    // Predicated region
    $region41: #{mhsa_forward.1} parent=5 // pred_check
      _
    $region42: #{mhsa_forward.1} parent=5 // pred_check_branch
      %216 = sbr.rel (%p213) target = $region44
    $region43: #{mhsa_forward.1} parent=5 // pred_region
      %s217 = ssub.s32 %s12, 1
      %p218 = scmp.lt.s32.totalorder %s17, 1
      %s219 = scalar_select %p218, %s17, 1
      %s220 = smul.addr %s219, 7
      %s221 = smul.addr %s220, 8
      %s222 = scalar_lea.vmem %s0, %s221
      %p223 = pneg %p38
      %p224 = pneg %p35
      %p225 = pneg %p59
      %p226 = pneg %p56
      %p227 = pneg %p80
      %p228 = pneg %p77
      %p229 = pneg %p101
      %p230 = pneg %p98
      %p231 = pneg %p122
      %p232 = pneg %p119
      %p233 = pneg %p143
      %p234 = pneg %p140
      %p235 = pneg %p169
      %p236 = pneg %p166
      %p237 = scmp.lt.s32.totalorder %s17, 1
      %s238 = scalar_select %p237, %s17, 1
      %s239 = smul.addr %s238, 7
      %s240 = smul.addr %s239, 8
      %s241 = scalar_lea.vmem %s6, %s240
      %p242 = scmp.lt.s32.totalorder %s17, 1
      %s243 = scalar_select %p242, %s17, 1
      %s244 = smul.addr %s243, 7
      %s245 = smul.addr %s244, 8
      %s246 = scalar_lea.vmem %s0, %s245
      %p247 = scmp.lt.s32.totalorder %s17, 1
      %s248 = scalar_select %p247, %s17, 1
      %s249 = smul.addr %s248, 7
      %s250 = smul.addr %s249, 8
      %s251 = scalar_lea.vmem %s6, %s250
      %v252 = vld [vmem:[%s246] sm:$0xff]
      %v253 = vld [vmem:[%s246 + $0x8] sm:$0xff]
      %v254 = vld [vmem:[%s246 + $0x10] sm:$0xff]
      %v255 = vld [vmem:[%s246 + $0x18] sm:$0xff]
      %v256 = vld [vmem:[%s246 + $0x20] sm:$0xff]
      %v257 = vld [vmem:[%s246 + $0x28] sm:$0xff]
      %v258 = vld [vmem:[%s246 + $0x30] sm:$0x1]
      %v259 = vld [vmem:[%s1] sm:$0xff]
      %v260 = vld [vmem:[%s1 + $0x8] sm:$0xff]
      %v261 = vld [vmem:[%s2] sm:$0x1]
      %v263 = vlaneseq
      %v264 = vshrl.u32 %v263, 7
      %v265 = vsub.s32 0, %v264
      %v266 = vrot.slane %v261, %v265
      %vm268 = vcmask 130048
      %v270 = vsel %vm268, %v252, 0
      %v273 = vsel %vm268, %v253, 0
      %v276 = vsel %vm268, %v254, 0
      %v279 = vsel %vm268, %v255, 0
      %v282 = vsel %vm268, %v256, 0
      %v285 = vsel %vm268, %v257, 0
      %v288 = vsel %vm268, %v258, 0
      %290 = vmatprep.subr.mxu0 0.0
      %291 = vmatpush1.msra.mxu0 %v259
      %292 = vmatprep.subr.mxu0 0.0
      %293 = vmatpush1.msra.mxu0 %v260
      %294 = vmatprep.subr.mxu0 0.0
      %295 = vmatpush1.msra.mxu0 0.0
      %296 = vmatprep.subr.mxu0 0.0
      %297 = vmatpush1.msra.mxu0 0.0
      %298 = vmatprep.subr.mxu0 0.0
      %299 = vmatpush1.msra.mxu0 0.0
      %300 = vmatprep.subr.mxu0 0.0
      %301 = vmatpush1.msra.mxu0 0.0
      %302 = vmatprep.subr.mxu0 0.0
      %303 = vmatpush1.msra.mxu0 0.0
      %304 = vmatprep.subr.mxu0 0.0
      %305 = vmatpush1.msra.mxu0 0.0
      %306 = vmatprep.subr.mxu0 0.0
      %307 = vmatpush1.msra.mxu0 0.0
      %308 = vmatprep.subr.mxu0 0.0
      %309 = vmatpush1.msra.mxu0 0.0
      %310 = vmatprep.subr.mxu0 0.0
      %311 = vmatpush1.msra.mxu0 0.0
      %312 = vmatprep.subr.mxu0 0.0
      %313 = vmatpush1.msra.mxu0 0.0
      %314 = vmatprep.subr.mxu0 0.0
      %315 = vmatpush1.msra.mxu0 0.0
      %316 = vmatprep.subr.mxu0 0.0
      %317 = vmatpush1.msra.mxu0 0.0
      %318 = vmatprep.subr.mxu0 0.0
      %319 = vmatpush1.msra.mxu0 0.0
      %320 = vmatprep.subr.mxu0 0.0
      %321 = vmatpush1.msra.mxu0 0.0
      %322 = vmatprep.subr.mxu0 0.0
      %323 = vmatpush1.msra.mxu0 0.0
      %324 = vmatprep.subr.mxu0 0.0
      %325 = vmatpush1.msra.mxu0 0.0
      %326 = vmatprep.subr.mxu0 0.0
      %327 = vmatpush1.msra.mxu0 0.0
      %328 = vmatprep.subr.mxu0 0.0
      %329 = vmatpush1.msra.mxu0 0.0
      %330 = vmatprep.subr.mxu0 0.0
      %331 = vmatpush1.msra.mxu0 0.0
      %332 = vmatprep.subr.mxu0 0.0
      %333 = vmatpush1.msra.mxu0 0.0
      %334 = vmatprep.subr.mxu0 0.0
      %335 = vmatpush1.msra.mxu0 0.0
      %336 = vmatprep.subr.mxu0 0.0
      %337 = vmatpush1.msra.mxu0 0.0
      %338 = vmatprep.subr.mxu0 0.0
      %339 = vmatpush1.msra.mxu0 0.0
      %340 = vmatprep.subr.mxu0 0.0
      %341 = vmatpush1.msra.mxu0 0.0
      %342 = vmatprep.subr.mxu0 0.0
      %343 = vmatpush1.msra.mxu0 0.0
      %344 = vmatprep.subr.mxu0 0.0
      %345 = vmatpush1.msra.mxu0 0.0
      %346 = vmatprep.subr.mxu0 0.0
      %347 = vmatpush1.msra.mxu0 0.0
      %348 = vmatprep.subr.mxu0 0.0
      %349 = vmatpush1.msra.mxu0 0.0
      %350 = vmatprep.subr.mxu0 0.0
      %351 = vmatpush1.msra.mxu0 0.0
      %352 = vmatprep.subr.mxu0 0.0
      %353 = vmatpush1.msra.mxu0 0.0
      %354 = vmatprep.mubr.f32.mxu0 0.0
      %355 = vmatmul.mubr.f32.gmra.mrb[0].mxu0 %v270
      %v356 = vpop.f32.mrb[0].mxu0
      %v357 = vadd.f32 %v266, %v356
      %v358 = vpop.f32.mrb[0].mxu0
      %359 = vmatprep.mubr.f32.mxu0 0.0
      %360 = vmatmul.mubr.f32.gmra.mrb[0].mxu0 %v273
      %v361 = vpop.f32.mrb[0].mxu0
      %v362 = vadd.f32 %v266, %v361
      %v363 = vpop.f32.mrb[0].mxu0
      %364 = vmatprep.mubr.f32.mxu0 0.0
      %365 = vmatmul.mubr.f32.gmra.mrb[0].mxu0 %v276
      %v366 = vpop.f32.mrb[0].mxu0
      %v367 = vadd.f32 %v266, %v366
      %v368 = vpop.f32.mrb[0].mxu0
      %369 = vmatprep.mubr.f32.mxu0 0.0
      %370 = vmatmul.mubr.f32.gmra.mrb[0].mxu0 %v279
      %v371 = vpop.f32.mrb[0].mxu0
      %v372 = vadd.f32 %v266, %v371
      %v373 = vpop.f32.mrb[0].mxu0
      %374 = vmatprep.mubr.f32.mxu0 0.0
      %375 = vmatmul.mubr.f32.gmra.mrb[0].mxu0 %v282
      %v376 = vpop.f32.mrb[0].mxu0
      %v377 = vadd.f32 %v266, %v376
      %v378 = vpop.f32.mrb[0].mxu0
      %379 = vmatprep.mubr.f32.mxu0 0.0
      %380 = vmatmul.mubr.f32.gmra.mrb[0].mxu0 %v285
      %v381 = vpop.f32.mrb[0].mxu0
      %v382 = vadd.f32 %v266, %v381
      %v383 = vpop.f32.mrb[0].mxu0
      %384 = vmatprep.mubr.f32.mxu0 0.0
      %385 = vmatmul.mubr.f32.gmra.mrb[0].mxu0 %v288
      %v386 = vpop.f32.mrb[0].mxu0
      %v387 = vadd.f32 %v266, %v386
      %v388 = vpop.f32.mrb[0].mxu0
      %389 = vdwg.mxu0
      %v390 = vld [vmem:[%s3] sm:$0xff]
      %v391 = vld [vmem:[%s3 + $0x8] sm:$0xff]
      %v392 = vmul.f32 %v357, 0.35355338
      %v393 = vmul.f32 %v362, 0.35355338
      %v394 = vmul.f32 %v367, 0.35355338
      %v395 = vmul.f32 %v372, 0.35355338
      %v396 = vmul.f32 %v377, 0.35355338
      %v397 = vmul.f32 %v382, 0.35355338
      %v398 = vmul.f32 %v387, 0.35355338
      %v399 = vld [vmem:[%s5] sm:$0xff]
      %v400 = vld [vmem:[%s5 + $0x8] sm:$0xff]
      %v401 = vld [vmem:[%s5 + $0x10] sm:$0xff]
      %v402 = vld [vmem:[%s5 + $0x18] sm:$0xff]
      %v403 = vld [vmem:[%s5 + $0x20] sm:$0xff]
      %v404 = vld [vmem:[%s5 + $0x28] sm:$0xff]
      %v405 = vld [vmem:[%s5 + $0x30] sm:$0x1]
      %413 = vrot.lane.b32.xlu0 %v357, 112
      %v414 = vpop.permute.xlu0 %413
      %415 = vrot.lane.b32.xlu0 %v362, 112
      %v416 = vpop.permute.xlu0 %415
      %417 = vrot.lane.b32.xlu0 %v367, 112
      %v418 = vpop.permute.xlu0 %417
      %419 = vrot.lane.b32.xlu0 %v372, 112
      %v420 = vpop.permute.xlu0 %419
      %421 = vrot.lane.b32.xlu0 %v377, 112
      %v422 = vpop.permute.xlu0 %421
      %423 = vrot.lane.b32.xlu0 %v382, 112
      %v424 = vpop.permute.xlu0 %423
      %425 = vrot.lane.b32.xlu0 %v387, 112
      %v426 = vpop.permute.xlu0 %425
      %vm427 = vcmask 64512
      %v429 = vsel %vm427, %v392, 0
      %v432 = vsel %vm427, %v393, 0
      %v435 = vsel %vm427, %v394, 0
      %v438 = vsel %vm427, %v395, 0
      %v441 = vsel %vm427, %v396, 0
      %v444 = vsel %vm427, %v397, 0
      %v447 = vsel %vm427, %v398, 0
      %v449 = vsel %vm427, %v414, 0
      %v451 = vsel %vm427, %v416, 0
      %v453 = vsel %vm427, %v418, 0
      %v455 = vsel %vm427, %v420, 0
      %v457 = vsel %vm427, %v422, 0
      %v459 = vsel %vm427, %v424, 0
      %v461 = vsel %vm427, %v426, 0
      %463 = vmatprep.subr.mxu0 0.0
      %464 = vmatpush1.xpose.msra.mxu0 %v449
      %465 = vmatprep.subr.mxu0 0.0
      %466 = vmatpush1.xpose.msra.mxu0 %v451
      %467 = vmatprep.subr.mxu0 0.0
      %468 = vmatpush1.xpose.msra.mxu0 %v453
      %469 = vmatprep.subr.mxu0 0.0
      %470 = vmatpush1.xpose.msra.mxu0 %v455
      %471 = vmatprep.subr.mxu0 0.0
      %472 = vmatpush1.xpose.msra.mxu0 %v457
      %473 = vmatprep.subr.mxu0 0.0
      %474 = vmatpush1.xpose.msra.mxu0 %v459
      %475 = vmatprep.subr.mxu0 0.0
      %476 = vmatpush1.xpose.msra.mxu0 %v461
      %477 = vmatprep.subr.mxu0 0.0
      %478 = vmatpush1.xpose.msra.mxu0 0.0
      %479 = vmatprep.subr.mxu0 0.0
      %480 = vmatpush1.xpose.msra.mxu0 0.0
      %481 = vmatprep.subr.mxu0 0.0
      %482 = vmatpush1.xpose.msra.mxu0 0.0
      %483 = vmatprep.subr.mxu0 0.0
      %484 = vmatpush1.xpose.msra.mxu0 0.0
      %485 = vmatprep.subr.mxu0 0.0
      %486 = vmatpush1.xpose.msra.mxu0 0.0
      %487 = vmatprep.subr.mxu0 0.0
      %488 = vmatpush1.xpose.msra.mxu0 0.0
      %489 = vmatprep.subr.mxu0 0.0
      %490 = vmatpush1.xpose.msra.mxu0 0.0
      %491 = vmatprep.subr.mxu0 0.0
      %492 = vmatpush1.xpose.msra.mxu0 0.0
      %493 = vmatprep.subr.mxu0 0.0
      %494 = vmatpush1.xpose.msra.mxu0 0.0
      %495 = vmatprep.subr.mxu0 0.0
      %496 = vmatpush1.xpose.msra.mxu0 0.0
      %497 = vmatprep.subr.mxu0 0.0
      %498 = vmatpush1.xpose.msra.mxu0 0.0
      %499 = vmatprep.subr.mxu0 0.0
      %500 = vmatpush1.xpose.msra.mxu0 0.0
      %501 = vmatprep.subr.mxu0 0.0
      %502 = vmatpush1.xpose.msra.mxu0 0.0
      %503 = vmatprep.subr.mxu0 0.0
      %504 = vmatpush1.xpose.msra.mxu0 0.0
      %505 = vmatprep.subr.mxu0 0.0
      %506 = vmatpush1.xpose.msra.mxu0 0.0
      %507 = vmatprep.subr.mxu0 0.0
      %508 = vmatpush1.xpose.msra.mxu0 0.0
      %509 = vmatprep.subr.mxu0 0.0
      %510 = vmatpush1.xpose.msra.mxu0 0.0
      %511 = vmatprep.subr.mxu0 0.0
      %512 = vmatpush1.xpose.msra.mxu0 0.0
      %513 = vmatprep.subr.mxu0 0.0
      %514 = vmatpush1.xpose.msra.mxu0 0.0
      %515 = vmatprep.subr.mxu0 0.0
      %516 = vmatpush1.xpose.msra.mxu0 0.0
      %517 = vmatprep.subr.mxu0 0.0
      %518 = vmatpush1.xpose.msra.mxu0 0.0
      %519 = vmatprep.subr.mxu0 0.0
      %520 = vmatpush1.xpose.msra.mxu0 0.0
      %521 = vmatprep.subr.mxu0 0.0
      %522 = vmatpush1.xpose.msra.mxu0 0.0
      %523 = vmatprep.subr.mxu0 0.0
      %524 = vmatpush1.xpose.msra.mxu0 0.0
      %525 = vmatprep.subr.mxu0 0.0
      %526 = vmatpush1.xpose.msra.mxu0 0.0
      %527 = vmatprep.mubr.f32.mxu0 0.0
      %528 = vmatmul.mubr.f32.gmra.mrb[0].mxu0 %v429
      %v529 = vpop.f32.mrb[0].mxu0
      %v530 = vadd.f32 %v399, %v529
      %v531 = vpop.f32.mrb[0].mxu0
      %532 = vmatprep.mubr.f32.mxu0 0.0
      %533 = vmatmul.mubr.f32.gmra.mrb[0].mxu0 %v432
      %v534 = vpop.f32.mrb[0].mxu0
      %v535 = vadd.f32 %v400, %v534
      %v536 = vpop.f32.mrb[0].mxu0
      %537 = vmatprep.mubr.f32.mxu0 0.0
      %538 = vmatmul.mubr.f32.gmra.mrb[0].mxu0 %v435
      %v539 = vpop.f32.mrb[0].mxu0
      %v540 = vadd.f32 %v401, %v539
      %v541 = vpop.f32.mrb[0].mxu0
      %542 = vmatprep.mubr.f32.mxu0 0.0
      %543 = vmatmul.mubr.f32.gmra.mrb[0].mxu0 %v438
      %v544 = vpop.f32.mrb[0].mxu0
      %v545 = vadd.f32 %v402, %v544
      %v546 = vpop.f32.mrb[0].mxu0
      %547 = vmatprep.mubr.f32.mxu0 0.0
      %548 = vmatmul.mubr.f32.gmra.mrb[0].mxu0 %v441
      %v549 = vpop.f32.mrb[0].mxu0
      %v550 = vadd.f32 %v403, %v549
      %v551 = vpop.f32.mrb[0].mxu0
      %552 = vmatprep.mubr.f32.mxu0 0.0
      %553 = vmatmul.mubr.f32.gmra.mrb[0].mxu0 %v444
      %v554 = vpop.f32.mrb[0].mxu0
      %v555 = vadd.f32 %v404, %v554
      %v556 = vpop.f32.mrb[0].mxu0
      %557 = vmatprep.mubr.f32.mxu0 0.0
      %558 = vmatmul.mubr.f32.gmra.mrb[0].mxu0 %v447
      %v559 = vpop.f32.mrb[0].mxu0
      %v560 = vadd.f32 %v405, %v559
      %v561 = vpop.f32.mrb[0].mxu0
      %562 = vdwg.mxu0
      %vm563 = vcmask 400384
      %v564 = vsel %vm563, %v530, -inf
      %565 = vmax.xlane.f32.xlu0 %v564
      %v566 = vpop.xlane.xlu0 %565
      %v567 = vsel %vm563, %v535, -inf
      %568 = vmax.xlane.f32.xlu0 %v567
      %v569 = vpop.xlane.xlu0 %568
      %v570 = vsel %vm563, %v540, -inf
      %571 = vmax.xlane.f32.xlu0 %v570
      %v572 = vpop.xlane.xlu0 %571
      %v573 = vsel %vm563, %v545, -inf
      %574 = vmax.xlane.f32.xlu0 %v573
      %v575 = vpop.xlane.xlu0 %574
      %v576 = vsel %vm563, %v550, -inf
      %577 = vmax.xlane.f32.xlu0 %v576
      %v578 = vpop.xlane.xlu0 %577
      %v579 = vsel %vm563, %v555, -inf
      %580 = vmax.xlane.f32.xlu0 %v579
      %v581 = vpop.xlane.xlu0 %580
      %vm582 = vcmask 393216
      %v583 = vsel %vm582, %v560, -inf
      %584 = vmax.xlane.f32.xlu0 %v583
      %v585 = vpop.xlane.xlu0 %584
      %v586 = vsub.f32 %v530, %v566
      %v587 = vsub.f32 %v535, %v569
      %v588 = vsub.f32 %v540, %v572
      %v589 = vsub.f32 %v545, %v575
      %v590 = vsub.f32 %v550, %v578
      %v591 = vsub.f32 %v555, %v581
      %v592 = vsub.f32 %v560, %v585
      %v593 = vmul.f32 %v586, 1.442695
      %v594 = vpow.pop %v593
      %v595 = vmul.f32 %v587, 1.442695
      %v596 = vpow.pop %v595
      %v597 = vmul.f32 %v588, 1.442695
      %v598 = vpow.pop %v597
      %v599 = vmul.f32 %v589, 1.442695
      %v600 = vpow.pop %v599
      %v601 = vmul.f32 %v590, 1.442695
      %v602 = vpow.pop %v601
      %v603 = vmul.f32 %v591, 1.442695
      %v604 = vpow.pop %v603
      %v605 = vmul.f32 %v592, 1.442695
      %v606 = vpow.pop %v605
      %v607 = vsel %vm563, %v594, 0.0
      %608 = vadd.xlane.f32.xlu0 %v607
      %v609 = vpop.xlane.xlu0 %608
      %v610 = vsel %vm563, %v596, 0.0
      %611 = vadd.xlane.f32.xlu0 %v610
      %v612 = vpop.xlane.xlu0 %611
      %v613 = vsel %vm563, %v598, 0.0
      %614 = vadd.xlane.f32.xlu0 %v613
      %v615 = vpop.xlane.xlu0 %614
      %v616 = vsel %vm563, %v600, 0.0
      %617 = vadd.xlane.f32.xlu0 %v616
      %v618 = vpop.xlane.xlu0 %617
      %v619 = vsel %vm563, %v602, 0.0
      %620 = vadd.xlane.f32.xlu0 %v619
      %v621 = vpop.xlane.xlu0 %620
      %v622 = vsel %vm563, %v604, 0.0
      %623 = vadd.xlane.f32.xlu0 %v622
      %v624 = vpop.xlane.xlu0 %623
      %v625 = vsel %vm582, %v606, 0.0
      %626 = vadd.xlane.f32.xlu0 %v625
      %v627 = vpop.xlane.xlu0 %626
      %v628 = vrcp.pop %v609
      %v629 = vrcp.pop %v612
      %v630 = vrcp.pop %v615
      %v631 = vrcp.pop %v618
      %v632 = vrcp.pop %v621
      %v633 = vrcp.pop %v624
      %v634 = vrcp.pop %v627
      %v635 = vmul.f32 %v594, %v628
      %v636 = vmul.f32 %v596, %v629
      %v637 = vmul.f32 %v598, %v630
      %v638 = vmul.f32 %v600, %v631
      %v639 = vmul.f32 %v602, %v632
      %v640 = vmul.f32 %v604, %v633
      %v641 = vmul.f32 %v606, %v634
      %642 = vrot.lane.b32.xlu0 %v357, 96
      %v643 = vpop.permute.xlu0 %642
      %644 = vrot.lane.b32.xlu0 %v362, 96
      %v645 = vpop.permute.xlu0 %644
      %646 = vrot.lane.b32.xlu0 %v367, 96
      %v647 = vpop.permute.xlu0 %646
      %648 = vrot.lane.b32.xlu0 %v372, 96
      %v649 = vpop.permute.xlu0 %648
      %650 = vrot.lane.b32.xlu0 %v377, 96
      %v651 = vpop.permute.xlu0 %650
      %652 = vrot.lane.b32.xlu0 %v382, 96
      %v653 = vpop.permute.xlu0 %652
      %654 = vrot.lane.b32.xlu0 %v387, 96
      %v655 = vpop.permute.xlu0 %654
      %v663 = vsel %vm563, %v635, 0
      %v666 = vsel %vm563, %v636, 0
      %v669 = vsel %vm563, %v637, 0
      %v672 = vsel %vm563, %v638, 0
      %v675 = vsel %vm563, %v639, 0
      %v678 = vsel %vm563, %v640, 0
      %v681 = vsel %vm563, %v641, 0
      %vm683 = vcmask 1040384
      %v684 = vsel %vm683, %v655, 0
      %686 = vmatprep.subr.mxu0 0.0
      %687 = vmatpush1.msra.mxu0 %v643
      %688 = vmatprep.subr.mxu0 0.0
      %689 = vmatpush1.msra.mxu0 %v645
      %690 = vmatprep.subr.mxu0 0.0
      %691 = vmatpush1.msra.mxu0 %v647
      %692 = vmatprep.subr.mxu0 0.0
      %693 = vmatpush1.msra.mxu0 %v649
      %694 = vmatprep.subr.mxu0 0.0
      %695 = vmatpush1.msra.mxu0 %v651
      %696 = vmatprep.subr.mxu0 0.0
      %697 = vmatpush1.msra.mxu0 %v653
      %698 = vmatprep.subr.mxu0 0.0
      %699 = vmatpush1.msra.mxu0 %v684
      %700 = vmatprep.subr.mxu0 0.0
      %701 = vmatpush1.msra.mxu0 0.0
      %702 = vmatprep.subr.mxu0 0.0
      %703 = vmatpush1.msra.mxu0 0.0
      %704 = vmatprep.subr.mxu0 0.0
      %705 = vmatpush1.msra.mxu0 0.0
      %706 = vmatprep.subr.mxu0 0.0
      %707 = vmatpush1.msra.mxu0 0.0
      %708 = vmatprep.subr.mxu0 0.0
      %709 = vmatpush1.msra.mxu0 0.0
      %710 = vmatprep.subr.mxu0 0.0
      %711 = vmatpush1.msra.mxu0 0.0
      %712 = vmatprep.subr.mxu0 0.0
      %713 = vmatpush1.msra.mxu0 0.0
      %714 = vmatprep.subr.mxu0 0.0
      %715 = vmatpush1.msra.mxu0 0.0
      %716 = vmatprep.subr.mxu0 0.0
      %717 = vmatpush1.msra.mxu0 0.0
      %718 = vmatprep.subr.mxu0 0.0
      %719 = vmatpush1.msra.mxu0 0.0
      %720 = vmatprep.subr.mxu0 0.0
      %721 = vmatpush1.msra.mxu0 0.0
      %722 = vmatprep.subr.mxu0 0.0
      %723 = vmatpush1.msra.mxu0 0.0
      %724 = vmatprep.subr.mxu0 0.0
      %725 = vmatpush1.msra.mxu0 0.0
      %726 = vmatprep.subr.mxu0 0.0
      %727 = vmatpush1.msra.mxu0 0.0
      %728 = vmatprep.subr.mxu0 0.0
      %729 = vmatpush1.msra.mxu0 0.0
      %730 = vmatprep.subr.mxu0 0.0
      %731 = vmatpush1.msra.mxu0 0.0
      %732 = vmatprep.subr.mxu0 0.0
      %733 = vmatpush1.msra.mxu0 0.0
      %734 = vmatprep.subr.mxu0 0.0
      %735 = vmatpush1.msra.mxu0 0.0
      %736 = vmatprep.subr.mxu0 0.0
      %737 = vmatpush1.msra.mxu0 0.0
      %738 = vmatprep.subr.mxu0 0.0
      %739 = vmatpush1.msra.mxu0 0.0
      %740 = vmatprep.subr.mxu0 0.0
      %741 = vmatpush1.msra.mxu0 0.0
      %742 = vmatprep.subr.mxu0 0.0
      %743 = vmatpush1.msra.mxu0 0.0
      %744 = vmatprep.subr.mxu0 0.0
      %745 = vmatpush1.msra.mxu0 0.0
      %746 = vmatprep.subr.mxu0 0.0
      %747 = vmatpush1.msra.mxu0 0.0
      %748 = vmatprep.subr.mxu0 0.0
      %749 = vmatpush1.msra.mxu0 0.0
      %750 = vmatprep.mubr.f32.mxu0 0.0
      %751 = vmatmul.mubr.f32.gmra.mrb[0].mxu0 %v663
      %v752 = vpop.f32.mrb[0].mxu0
      %v753 = vadd.f32 0.0, %v752
      %v754 = vpop.f32.mrb[0].mxu0
      %755 = vmatprep.mubr.f32.mxu0 0.0
      %756 = vmatmul.mubr.f32.gmra.mrb[0].mxu0 %v666
      %v757 = vpop.f32.mrb[0].mxu0
      %v758 = vadd.f32 0.0, %v757
      %v759 = vpop.f32.mrb[0].mxu0
      %760 = vmatprep.mubr.f32.mxu0 0.0
      %761 = vmatmul.mubr.f32.gmra.mrb[0].mxu0 %v669
      %v762 = vpop.f32.mrb[0].mxu0
      %v763 = vadd.f32 0.0, %v762
      %v764 = vpop.f32.mrb[0].mxu0
      %765 = vmatprep.mubr.f32.mxu0 0.0
      %766 = vmatmul.mubr.f32.gmra.mrb[0].mxu0 %v672
      %v767 = vpop.f32.mrb[0].mxu0
      %v768 = vadd.f32 0.0, %v767
      %v769 = vpop.f32.mrb[0].mxu0
      %770 = vmatprep.mubr.f32.mxu0 0.0
      %771 = vmatmul.mubr.f32.gmra.mrb[0].mxu0 %v675
      %v772 = vpop.f32.mrb[0].mxu0
      %v773 = vadd.f32 0.0, %v772
      %v774 = vpop.f32.mrb[0].mxu0
      %775 = vmatprep.mubr.f32.mxu0 0.0
      %776 = vmatmul.mubr.f32.gmra.mrb[0].mxu0 %v678
      %v777 = vpop.f32.mrb[0].mxu0
      %v778 = vadd.f32 0.0, %v777
      %v779 = vpop.f32.mrb[0].mxu0
      %780 = vmatprep.mubr.f32.mxu0 0.0
      %781 = vmatmul.mubr.f32.gmra.mrb[0].mxu0 %v681
      %v782 = vpop.f32.mrb[0].mxu0
      %v783 = vadd.f32 0.0, %v782
      %v784 = vpop.f32.mrb[0].mxu0
      %785 = vdwg.mxu0
      %s786 = scalar_lea.vmem %s5, 56
      %v787 = vld [vmem:[%s786] sm:$0xff]
      %v788 = vld [vmem:[%s786 + $0x8] sm:$0xff]
      %v789 = vld [vmem:[%s786 + $0x10] sm:$0xff]
      %v790 = vld [vmem:[%s786 + $0x18] sm:$0xff]
      %v791 = vld [vmem:[%s786 + $0x20] sm:$0xff]
      %v792 = vld [vmem:[%s786 + $0x28] sm:$0xff]
      %v793 = vld [vmem:[%s786 + $0x30] sm:$0x1]
      %794 = vrot.lane.b32.xlu0 %v392, 120
      %v795 = vpop.permute.xlu0 %794
      %796 = vrot.lane.b32.xlu0 %v393, 120
      %v797 = vpop.permute.xlu0 %796
      %798 = vrot.lane.b32.xlu0 %v394, 120
      %v799 = vpop.permute.xlu0 %798
      %800 = vrot.lane.b32.xlu0 %v395, 120
      %v801 = vpop.permute.xlu0 %800
      %802 = vrot.lane.b32.xlu0 %v396, 120
      %v803 = vpop.permute.xlu0 %802
      %804 = vrot.lane.b32.xlu0 %v397, 120
      %v805 = vpop.permute.xlu0 %804
      %806 = vrot.lane.b32.xlu0 %v398, 120
      %v807 = vpop.permute.xlu0 %806
      %808 = vrot.lane.b32.xlu0 %v357, 104
      %v809 = vpop.permute.xlu0 %808
      %810 = vrot.lane.b32.xlu0 %v362, 104
      %v811 = vpop.permute.xlu0 %810
      %812 = vrot.lane.b32.xlu0 %v367, 104
      %v813 = vpop.permute.xlu0 %812
      %814 = vrot.lane.b32.xlu0 %v372, 104
      %v815 = vpop.permute.xlu0 %814
      %816 = vrot.lane.b32.xlu0 %v377, 104
      %v817 = vpop.permute.xlu0 %816
      %818 = vrot.lane.b32.xlu0 %v382, 104
      %v819 = vpop.permute.xlu0 %818
      %820 = vrot.lane.b32.xlu0 %v387, 104
      %v821 = vpop.permute.xlu0 %820
      %v822 = vsel %vm427, %v795, 0
      %v824 = vsel %vm427, %v797, 0
      %v826 = vsel %vm427, %v799, 0
      %v828 = vsel %vm427, %v801, 0
      %v830 = vsel %vm427, %v803, 0
      %v832 = vsel %vm427, %v805, 0
      %v834 = vsel %vm427, %v807, 0
      %v836 = vsel %vm427, %v809, 0
      %v838 = vsel %vm427, %v811, 0
      %v840 = vsel %vm427, %v813, 0
      %v842 = vsel %vm427, %v815, 0
      %v844 = vsel %vm427, %v817, 0
      %v846 = vsel %vm427, %v819, 0
      %v848 = vsel %vm427, %v821, 0
      %850 = vmatprep.subr.mxu0 0.0
      %851 = vmatpush1.xpose.msra.mxu0 %v836
      %852 = vmatprep.subr.mxu0 0.0
      %853 = vmatpush1.xpose.msra.mxu0 %v838
      %854 = vmatprep.subr.mxu0 0.0
      %855 = vmatpush1.xpose.msra.mxu0 %v840
      %856 = vmatprep.subr.mxu0 0.0
      %857 = vmatpush1.xpose.msra.mxu0 %v842
      %858 = vmatprep.subr.mxu0 0.0
      %859 = vmatpush1.xpose.msra.mxu0 %v844
      %860 = vmatprep.subr.mxu0 0.0
      %861 = vmatpush1.xpose.msra.mxu0 %v846
      %862 = vmatprep.subr.mxu0 0.0
      %863 = vmatpush1.xpose.msra.mxu0 %v848
      %864 = vmatprep.subr.mxu0 0.0
      %865 = vmatpush1.xpose.msra.mxu0 0.0
      %866 = vmatprep.subr.mxu0 0.0
      %867 = vmatpush1.xpose.msra.mxu0 0.0
      %868 = vmatprep.subr.mxu0 0.0
      %869 = vmatpush1.xpose.msra.mxu0 0.0
      %870 = vmatprep.subr.mxu0 0.0
      %871 = vmatpush1.xpose.msra.mxu0 0.0
      %872 = vmatprep.subr.mxu0 0.0
      %873 = vmatpush1.xpose.msra.mxu0 0.0
      %874 = vmatprep.subr.mxu0 0.0
      %875 = vmatpush1.xpose.msra.mxu0 0.0
      %876 = vmatprep.subr.mxu0 0.0
      %877 = vmatpush1.xpose.msra.mxu0 0.0
      %878 = vmatprep.subr.mxu0 0.0
      %879 = vmatpush1.xpose.msra.mxu0 0.0
      %880 = vmatprep.subr.mxu0 0.0
      %881 = vmatpush1.xpose.msra.mxu0 0.0
      %882 = vmatprep.subr.mxu0 0.0
      %883 = vmatpush1.xpose.msra.mxu0 0.0
      %884 = vmatprep.subr.mxu0 0.0
      %885 = vmatpush1.xpose.msra.mxu0 0.0
      %886 = vmatprep.subr.mxu0 0.0
      %887 = vmatpush1.xpose.msra.mxu0 0.0
      %888 = vmatprep.subr.mxu0 0.0
      %889 = vmatpush1.xpose.msra.mxu0 0.0
      %890 = vmatprep.subr.mxu0 0.0
      %891 = vmatpush1.xpose.msra.mxu0 0.0
      %892 = vmatprep.subr.mxu0 0.0
      %893 = vmatpush1.xpose.msra.mxu0 0.0
      %894 = vmatprep.subr.mxu0 0.0
      %895 = vmatpush1.xpose.msra.mxu0 0.0
      %896 = vmatprep.subr.mxu0 0.0
      %897 = vmatpush1.xpose.msra.mxu0 0.0
      %898 = vmatprep.subr.mxu0 0.0
      %899 = vmatpush1.xpose.msra.mxu0 0.0
      %900 = vmatprep.subr.mxu0 0.0
      %901 = vmatpush1.xpose.msra.mxu0 0.0
      %902 = vmatprep.subr.mxu0 0.0
      %903 = vmatpush1.xpose.msra.mxu0 0.0
      %904 = vmatprep.subr.mxu0 0.0
      %905 = vmatpush1.xpose.msra.mxu0 0.0
      %906 = vmatprep.subr.mxu0 0.0
      %907 = vmatpush1.xpose.msra.mxu0 0.0
      %908 = vmatprep.subr.mxu0 0.0
      %909 = vmatpush1.xpose.msra.mxu0 0.0
      %910 = vmatprep.subr.mxu0 0.0
      %911 = vmatpush1.xpose.msra.mxu0 0.0
      %912 = vmatprep.subr.mxu0 0.0
      %913 = vmatpush1.xpose.msra.mxu0 0.0
      %914 = vmatprep.mubr.f32.mxu0 0.0
      %915 = vmatmul.mubr.f32.gmra.mrb[0].mxu0 %v822
      %v916 = vpop.f32.mrb[0].mxu0
      %v917 = vadd.f32 %v787, %v916
      %v918 = vpop.f32.mrb[0].mxu0
      %919 = vmatprep.mubr.f32.mxu0 0.0
      %920 = vmatmul.mubr.f32.gmra.mrb[0].mxu0 %v824
      %v921 = vpop.f32.mrb[0].mxu0
      %v922 = vadd.f32 %v788, %v921
      %v923 = vpop.f32.mrb[0].mxu0
      %924 = vmatprep.mubr.f32.mxu0 0.0
      %925 = vmatmul.mubr.f32.gmra.mrb[0].mxu0 %v826
      %v926 = vpop.f32.mrb[0].mxu0
      %v927 = vadd.f32 %v789, %v926
      %v928 = vpop.f32.mrb[0].mxu0
      %929 = vmatprep.mubr.f32.mxu0 0.0
      %930 = vmatmul.mubr.f32.gmra.mrb[0].mxu0 %v828
      %v931 = vpop.f32.mrb[0].mxu0
      %v932 = vadd.f32 %v790, %v931
      %v933 = vpop.f32.mrb[0].mxu0
      %934 = vmatprep.mubr.f32.mxu0 0.0
      %935 = vmatmul.mubr.f32.gmra.mrb[0].mxu0 %v830
      %v936 = vpop.f32.mrb[0].mxu0
      %v937 = vadd.f32 %v791, %v936
      %v938 = vpop.f32.mrb[0].mxu0
      %939 = vmatprep.mubr.f32.mxu0 0.0
      %940 = vmatmul.mubr.f32.gmra.mrb[0].mxu0 %v832
      %v941 = vpop.f32.mrb[0].mxu0
      %v942 = vadd.f32 %v792, %v941
      %v943 = vpop.f32.mrb[0].mxu0
      %944 = vmatprep.mubr.f32.mxu0 0.0
      %945 = vmatmul.mubr.f32.gmra.mrb[0].mxu0 %v834
      %v946 = vpop.f32.mrb[0].mxu0
      %v947 = vadd.f32 %v793, %v946
      %v948 = vpop.f32.mrb[0].mxu0
      %949 = vdwg.mxu0
      %v950 = vsel %vm563, %v917, -inf
      %951 = vmax.xlane.f32.xlu0 %v950
      %v952 = vpop.xlane.xlu0 %951
      %v953 = vsel %vm563, %v922, -inf
      %954 = vmax.xlane.f32.xlu0 %v953
      %v955 = vpop.xlane.xlu0 %954
      %v956 = vsel %vm563, %v927, -inf
      %957 = vmax.xlane.f32.xlu0 %v956
      %v958 = vpop.xlane.xlu0 %957
      %v959 = vsel %vm563, %v932, -inf
      %960 = vmax.xlane.f32.xlu0 %v959
      %v961 = vpop.xlane.xlu0 %960
      %v962 = vsel %vm563, %v937, -inf
      %963 = vmax.xlane.f32.xlu0 %v962
      %v964 = vpop.xlane.xlu0 %963
      %v965 = vsel %vm563, %v942, -inf
      %966 = vmax.xlane.f32.xlu0 %v965
      %v967 = vpop.xlane.xlu0 %966
      %v968 = vsel %vm582, %v947, -inf
      %969 = vmax.xlane.f32.xlu0 %v968
      %v970 = vpop.xlane.xlu0 %969
      %v971 = vsub.f32 %v917, %v952
      %v972 = vsub.f32 %v922, %v955
      %v973 = vsub.f32 %v927, %v958
      %v974 = vsub.f32 %v932, %v961
      %v975 = vsub.f32 %v937, %v964
      %v976 = vsub.f32 %v942, %v967
      %v977 = vsub.f32 %v947, %v970
      %v978 = vmul.f32 %v971, 1.442695
      %v979 = vpow.pop %v978
      %v980 = vmul.f32 %v972, 1.442695
      %v981 = vpow.pop %v980
      %v982 = vmul.f32 %v973, 1.442695
      %v983 = vpow.pop %v982
      %v984 = vmul.f32 %v974, 1.442695
      %v985 = vpow.pop %v984
      %v986 = vmul.f32 %v975, 1.442695
      %v987 = vpow.pop %v986
      %v988 = vmul.f32 %v976, 1.442695
      %v989 = vpow.pop %v988
      %v990 = vmul.f32 %v977, 1.442695
      %v991 = vpow.pop %v990
      %v992 = vsel %vm563, %v979, 0.0
      %993 = vadd.xlane.f32.xlu0 %v992
      %v994 = vpop.xlane.xlu0 %993
      %v995 = vsel %vm563, %v981, 0.0
      %996 = vadd.xlane.f32.xlu0 %v995
      %v997 = vpop.xlane.xlu0 %996
      %v998 = vsel %vm563, %v983, 0.0
      %999 = vadd.xlane.f32.xlu0 %v998
      %v1000 = vpop.xlane.xlu0 %999
      %v1001 = vsel %vm563, %v985, 0.0
      %1002 = vadd.xlane.f32.xlu0 %v1001
      %v1003 = vpop.xlane.xlu0 %1002
      %v1004 = vsel %vm563, %v987, 0.0
      %1005 = vadd.xlane.f32.xlu0 %v1004
      %v1006 = vpop.xlane.xlu0 %1005
      %v1007 = vsel %vm563, %v989, 0.0
      %1008 = vadd.xlane.f32.xlu0 %v1007
      %v1009 = vpop.xlane.xlu0 %1008
      %v1010 = vsel %vm582, %v991, 0.0
      %1011 = vadd.xlane.f32.xlu0 %v1010
      %v1012 = vpop.xlane.xlu0 %1011
      %v1013 = vrcp.pop %v994
      %v1014 = vrcp.pop %v997
      %v1015 = vrcp.pop %v1000
      %v1016 = vrcp.pop %v1003
      %v1017 = vrcp.pop %v1006
      %v1018 = vrcp.pop %v1009
      %v1019 = vrcp.pop %v1012
      %v1020 = vmul.f32 %v979, %v1013
      %v1021 = vmul.f32 %v981, %v1014
      %v1022 = vmul.f32 %v983, %v1015
      %v1023 = vmul.f32 %v985, %v1016
      %v1024 = vmul.f32 %v987, %v1017
      %v1025 = vmul.f32 %v989, %v1018
      %v1026 = vmul.f32 %v991, %v1019
      %1027 = vrot.lane.b32.xlu0 %v357, 88
      %v1028 = vpop.permute.xlu0 %1027
      %1029 = vrot.lane.b32.xlu0 %v362, 88
      %v1030 = vpop.permute.xlu0 %1029
      %1031 = vrot.lane.b32.xlu0 %v367, 88
      %v1032 = vpop.permute.xlu0 %1031
      %1033 = vrot.lane.b32.xlu0 %v372, 88
      %v1034 = vpop.permute.xlu0 %1033
      %1035 = vrot.lane.b32.xlu0 %v377, 88
      %v1036 = vpop.permute.xlu0 %1035
      %1037 = vrot.lane.b32.xlu0 %v382, 88
      %v1038 = vpop.permute.xlu0 %1037
      %1039 = vrot.lane.b32.xlu0 %v387, 88
      %v1040 = vpop.permute.xlu0 %1039
      %v1048 = vsel %vm563, %v1020, 0
      %v1051 = vsel %vm563, %v1021, 0
      %v1054 = vsel %vm563, %v1022, 0
      %v1057 = vsel %vm563, %v1023, 0
      %v1060 = vsel %vm563, %v1024, 0
      %v1063 = vsel %vm563, %v1025, 0
      %v1066 = vsel %vm563, %v1026, 0
      %v1068 = vsel %vm683, %v1040, 0
      %1070 = vmatprep.subr.mxu0 0.0
      %1071 = vmatpush1.msra.mxu0 %v1028
      %1072 = vmatprep.subr.mxu0 0.0
      %1073 = vmatpush1.msra.mxu0 %v1030
      %1074 = vmatprep.subr.mxu0 0.0
      %1075 = vmatpush1.msra.mxu0 %v1032
      %1076 = vmatprep.subr.mxu0 0.0
      %1077 = vmatpush1.msra.mxu0 %v1034
      %1078 = vmatprep.subr.mxu0 0.0
      %1079 = vmatpush1.msra.mxu0 %v1036
      %1080 = vmatprep.subr.mxu0 0.0
      %1081 = vmatpush1.msra.mxu0 %v1038
      %1082 = vmatprep.subr.mxu0 0.0
      %1083 = vmatpush1.msra.mxu0 %v1068
      %1084 = vmatprep.subr.mxu0 0.0
      %1085 = vmatpush1.msra.mxu0 0.0
      %1086 = vmatprep.subr.mxu0 0.0
      %1087 = vmatpush1.msra.mxu0 0.0
      %1088 = vmatprep.subr.mxu0 0.0
      %1089 = vmatpush1.msra.mxu0 0.0
      %1090 = vmatprep.subr.mxu0 0.0
      %1091 = vmatpush1.msra.mxu0 0.0
      %1092 = vmatprep.subr.mxu0 0.0
      %1093 = vmatpush1.msra.mxu0 0.0
      %1094 = vmatprep.subr.mxu0 0.0
      %1095 = vmatpush1.msra.mxu0 0.0
      %1096 = vmatprep.subr.mxu0 0.0
      %1097 = vmatpush1.msra.mxu0 0.0
      %1098 = vmatprep.subr.mxu0 0.0
      %1099 = vmatpush1.msra.mxu0 0.0
      %1100 = vmatprep.subr.mxu0 0.0
      %1101 = vmatpush1.msra.mxu0 0.0
      %1102 = vmatprep.subr.mxu0 0.0
      %1103 = vmatpush1.msra.mxu0 0.0
      %1104 = vmatprep.subr.mxu0 0.0
      %1105 = vmatpush1.msra.mxu0 0.0
      %1106 = vmatprep.subr.mxu0 0.0
      %1107 = vmatpush1.msra.mxu0 0.0
      %1108 = vmatprep.subr.mxu0 0.0
      %1109 = vmatpush1.msra.mxu0 0.0
      %1110 = vmatprep.subr.mxu0 0.0
      %1111 = vmatpush1.msra.mxu0 0.0
      %1112 = vmatprep.subr.mxu0 0.0
      %1113 = vmatpush1.msra.mxu0 0.0
      %1114 = vmatprep.subr.mxu0 0.0
      %1115 = vmatpush1.msra.mxu0 0.0
      %1116 = vmatprep.subr.mxu0 0.0
      %1117 = vmatpush1.msra.mxu0 0.0
      %1118 = vmatprep.subr.mxu0 0.0
      %1119 = vmatpush1.msra.mxu0 0.0
      %1120 = vmatprep.subr.mxu0 0.0
      %1121 = vmatpush1.msra.mxu0 0.0
      %1122 = vmatprep.subr.mxu0 0.0
      %1123 = vmatpush1.msra.mxu0 0.0
      %1124 = vmatprep.subr.mxu0 0.0
      %1125 = vmatpush1.msra.mxu0 0.0
      %1126 = vmatprep.subr.mxu0 0.0
      %1127 = vmatpush1.msra.mxu0 0.0
      %1128 = vmatprep.subr.mxu0 0.0
      %1129 = vmatpush1.msra.mxu0 0.0
      %1130 = vmatprep.subr.mxu0 0.0
      %1131 = vmatpush1.msra.mxu0 0.0
      %1132 = vmatprep.subr.mxu0 0.0
      %1133 = vmatpush1.msra.mxu0 0.0
      %1134 = vmatprep.mubr.f32.mxu0 0.0
      %1135 = vmatmul.mubr.f32.gmra.mrb[0].mxu0 %v1048
      %v1136 = vpop.f32.mrb[0].mxu0
      %v1137 = vadd.f32 0.0, %v1136
      %v1138 = vpop.f32.mrb[0].mxu0
      %1139 = vmatprep.mubr.f32.mxu0 0.0
      %1140 = vmatmul.mubr.f32.gmra.mrb[0].mxu0 %v1051
      %v1141 = vpop.f32.mrb[0].mxu0
      %v1142 = vadd.f32 0.0, %v1141
      %v1143 = vpop.f32.mrb[0].mxu0
      %1144 = vmatprep.mubr.f32.mxu0 0.0
      %1145 = vmatmul.mubr.f32.gmra.mrb[0].mxu0 %v1054
      %v1146 = vpop.f32.mrb[0].mxu0
      %v1147 = vadd.f32 0.0, %v1146
      %v1148 = vpop.f32.mrb[0].mxu0
      %1149 = vmatprep.mubr.f32.mxu0 0.0
      %1150 = vmatmul.mubr.f32.gmra.mrb[0].mxu0 %v1057
      %v1151 = vpop.f32.mrb[0].mxu0
      %v1152 = vadd.f32 0.0, %v1151
      %v1153 = vpop.f32.mrb[0].mxu0
      %1154 = vmatprep.mubr.f32.mxu0 0.0
      %1155 = vmatmul.mubr.f32.gmra.mrb[0].mxu0 %v1060
      %v1156 = vpop.f32.mrb[0].mxu0
      %v1157 = vadd.f32 0.0, %v1156
      %v1158 = vpop.f32.mrb[0].mxu0
      %1159 = vmatprep.mubr.f32.mxu0 0.0
      %1160 = vmatmul.mubr.f32.gmra.mrb[0].mxu0 %v1063
      %v1161 = vpop.f32.mrb[0].mxu0
      %v1162 = vadd.f32 0.0, %v1161
      %v1163 = vpop.f32.mrb[0].mxu0
      %1164 = vmatprep.mubr.f32.mxu0 0.0
      %1165 = vmatmul.mubr.f32.gmra.mrb[0].mxu0 %v1066
      %v1166 = vpop.f32.mrb[0].mxu0
      %v1167 = vadd.f32 0.0, %v1166
      %v1168 = vpop.f32.mrb[0].mxu0
      %1169 = vdwg.mxu0
      %v1171 = vsel %vm427, %v1137, 0
      %v1174 = vsel %vm427, %v1142, 0
      %v1177 = vsel %vm427, %v1147, 0
      %v1180 = vsel %vm427, %v1152, 0
      %v1183 = vsel %vm427, %v1157, 0
      %v1186 = vsel %vm427, %v1162, 0
      %v1189 = vsel %vm427, %v1167, 0
      %1191 = vmatprep.subr.mxu0 0.0
      %1192 = vmatpush1.msra.mxu0 %v391
      %1193 = vmatprep.subr.mxu0 0.0
      %1194 = vmatpush1.msra.mxu0 0.0
      %1195 = vmatprep.subr.mxu0 0.0
      %1196 = vmatpush1.msra.mxu0 0.0
      %1197 = vmatprep.subr.mxu0 0.0
      %1198 = vmatpush1.msra.mxu0 0.0
      %1199 = vmatprep.subr.mxu0 0.0
      %1200 = vmatpush1.msra.mxu0 0.0
      %1201 = vmatprep.subr.mxu0 0.0
      %1202 = vmatpush1.msra.mxu0 0.0
      %1203 = vmatprep.subr.mxu0 0.0
      %1204 = vmatpush1.msra.mxu0 0.0
      %1205 = vmatprep.subr.mxu0 0.0
      %1206 = vmatpush1.msra.mxu0 0.0
      %1207 = vmatprep.subr.mxu0 0.0
      %1208 = vmatpush1.msra.mxu0 0.0
      %1209 = vmatprep.subr.mxu0 0.0
      %1210 = vmatpush1.msra.mxu0 0.0
      %1211 = vmatprep.subr.mxu0 0.0
      %1212 = vmatpush1.msra.mxu0 0.0
      %1213 = vmatprep.subr.mxu0 0.0
      %1214 = vmatpush1.msra.mxu0 0.0
      %1215 = vmatprep.subr.mxu0 0.0
      %1216 = vmatpush1.msra.mxu0 0.0
      %1217 = vmatprep.subr.mxu0 0.0
      %1218 = vmatpush1.msra.mxu0 0.0
      %1219 = vmatprep.subr.mxu0 0.0
      %1220 = vmatpush1.msra.mxu0 0.0
      %1221 = vmatprep.subr.mxu0 0.0
      %1222 = vmatpush1.msra.mxu0 0.0
      %1223 = vmatprep.subr.mxu0 0.0
      %1224 = vmatpush1.msra.mxu0 0.0
      %1225 = vmatprep.subr.mxu0 0.0
      %1226 = vmatpush1.msra.mxu0 0.0
      %1227 = vmatprep.subr.mxu0 0.0
      %1228 = vmatpush1.msra.mxu0 0.0
      %1229 = vmatprep.subr.mxu0 0.0
      %1230 = vmatpush1.msra.mxu0 0.0
      %1231 = vmatprep.subr.mxu0 0.0
      %1232 = vmatpush1.msra.mxu0 0.0
      %1233 = vmatprep.subr.mxu0 0.0
      %1234 = vmatpush1.msra.mxu0 0.0
      %1235 = vmatprep.subr.mxu0 0.0
      %1236 = vmatpush1.msra.mxu0 0.0
      %1237 = vmatprep.subr.mxu0 0.0
      %1238 = vmatpush1.msra.mxu0 0.0
      %1239 = vmatprep.subr.mxu0 0.0
      %1240 = vmatpush1.msra.mxu0 0.0
      %1241 = vmatprep.subr.mxu0 0.0
      %1242 = vmatpush1.msra.mxu0 0.0
      %1243 = vmatprep.subr.mxu0 0.0
      %1244 = vmatpush1.msra.mxu0 0.0
      %1245 = vmatprep.subr.mxu0 0.0
      %1246 = vmatpush1.msra.mxu0 0.0
      %1247 = vmatprep.subr.mxu0 0.0
      %1248 = vmatpush1.msra.mxu0 0.0
      %1249 = vmatprep.subr.mxu0 0.0
      %1250 = vmatpush1.msra.mxu0 0.0
      %1251 = vmatprep.subr.mxu0 0.0
      %1252 = vmatpush1.msra.mxu0 0.0
      %1253 = vmatprep.subr.mxu0 0.0
      %1254 = vmatpush1.msra.mxu0 0.0
      %1255 = vmatprep.mubr.f32.mxu0 0.0
      %1256 = vmatmul.mubr.f32.gmra.mrb[0].mxu0 %v1171
      %v1257 = vpop.f32.mrb[0].mxu0
      %v1258 = vadd.f32 0.0, %v1257
      %v1259 = vpop.f32.mrb[0].mxu0
      %1260 = vmatprep.mubr.f32.mxu0 0.0
      %1261 = vmatmul.mubr.f32.gmra.mrb[0].mxu0 %v1174
      %v1262 = vpop.f32.mrb[0].mxu0
      %v1263 = vadd.f32 0.0, %v1262
      %v1264 = vpop.f32.mrb[0].mxu0
      %1265 = vmatprep.mubr.f32.mxu0 0.0
      %1266 = vmatmul.mubr.f32.gmra.mrb[0].mxu0 %v1177
      %v1267 = vpop.f32.mrb[0].mxu0
      %v1268 = vadd.f32 0.0, %v1267
      %v1269 = vpop.f32.mrb[0].mxu0
      %1270 = vmatprep.mubr.f32.mxu0 0.0
      %1271 = vmatmul.mubr.f32.gmra.mrb[0].mxu0 %v1180
      %v1272 = vpop.f32.mrb[0].mxu0
      %v1273 = vadd.f32 0.0, %v1272
      %v1274 = vpop.f32.mrb[0].mxu0
      %1275 = vmatprep.mubr.f32.mxu0 0.0
      %1276 = vmatmul.mubr.f32.gmra.mrb[0].mxu0 %v1183
      %v1277 = vpop.f32.mrb[0].mxu0
      %v1278 = vadd.f32 0.0, %v1277
      %v1279 = vpop.f32.mrb[0].mxu0
      %1280 = vmatprep.mubr.f32.mxu0 0.0
      %1281 = vmatmul.mubr.f32.gmra.mrb[0].mxu0 %v1186
      %v1282 = vpop.f32.mrb[0].mxu0
      %v1283 = vadd.f32 0.0, %v1282
      %v1284 = vpop.f32.mrb[0].mxu0
      %1285 = vmatprep.mubr.f32.mxu0 0.0
      %1286 = vmatmul.mubr.f32.gmra.mrb[0].mxu0 %v1189
      %v1287 = vpop.f32.mrb[0].mxu0
      %v1288 = vadd.f32 0.0, %v1287
      %v1289 = vpop.f32.mrb[0].mxu0
      %1290 = vdwg.mxu0
      %v1292 = vsel %vm427, %v753, 0
      %v1295 = vsel %vm427, %v758, 0
      %v1298 = vsel %vm427, %v763, 0
      %v1301 = vsel %vm427, %v768, 0
      %v1304 = vsel %vm427, %v773, 0
      %v1307 = vsel %vm427, %v778, 0
      %v1310 = vsel %vm427, %v783, 0
      %1312 = vmatprep.subr.mxu0 0.0
      %1313 = vmatpush1.msra.mxu0 %v390
      %1314 = vmatprep.subr.mxu0 0.0
      %1315 = vmatpush1.msra.mxu0 0.0
      %1316 = vmatprep.subr.mxu0 0.0
      %1317 = vmatpush1.msra.mxu0 0.0
      %1318 = vmatprep.subr.mxu0 0.0
      %1319 = vmatpush1.msra.mxu0 0.0
      %1320 = vmatprep.subr.mxu0 0.0
      %1321 = vmatpush1.msra.mxu0 0.0
      %1322 = vmatprep.subr.mxu0 0.0
      %1323 = vmatpush1.msra.mxu0 0.0
      %1324 = vmatprep.subr.mxu0 0.0
      %1325 = vmatpush1.msra.mxu0 0.0
      %1326 = vmatprep.subr.mxu0 0.0
      %1327 = vmatpush1.msra.mxu0 0.0
      %1328 = vmatprep.subr.mxu0 0.0
      %1329 = vmatpush1.msra.mxu0 0.0
      %1330 = vmatprep.subr.mxu0 0.0
      %1331 = vmatpush1.msra.mxu0 0.0
      %1332 = vmatprep.subr.mxu0 0.0
      %1333 = vmatpush1.msra.mxu0 0.0
      %1334 = vmatprep.subr.mxu0 0.0
      %1335 = vmatpush1.msra.mxu0 0.0
      %1336 = vmatprep.subr.mxu0 0.0
      %1337 = vmatpush1.msra.mxu0 0.0
      %1338 = vmatprep.subr.mxu0 0.0
      %1339 = vmatpush1.msra.mxu0 0.0
      %1340 = vmatprep.subr.mxu0 0.0
      %1341 = vmatpush1.msra.mxu0 0.0
      %1342 = vmatprep.subr.mxu0 0.0
      %1343 = vmatpush1.msra.mxu0 0.0
      %1344 = vmatprep.subr.mxu0 0.0
      %1345 = vmatpush1.msra.mxu0 0.0
      %1346 = vmatprep.subr.mxu0 0.0
      %1347 = vmatpush1.msra.mxu0 0.0
      %1348 = vmatprep.subr.mxu0 0.0
      %1349 = vmatpush1.msra.mxu0 0.0
      %1350 = vmatprep.subr.mxu0 0.0
      %1351 = vmatpush1.msra.mxu0 0.0
      %1352 = vmatprep.subr.mxu0 0.0
      %1353 = vmatpush1.msra.mxu0 0.0
      %1354 = vmatprep.subr.mxu0 0.0
      %1355 = vmatpush1.msra.mxu0 0.0
      %1356 = vmatprep.subr.mxu0 0.0
      %1357 = vmatpush1.msra.mxu0 0.0
      %1358 = vmatprep.subr.mxu0 0.0
      %1359 = vmatpush1.msra.mxu0 0.0
      %1360 = vmatprep.subr.mxu0 0.0
      %1361 = vmatpush1.msra.mxu0 0.0
      %1362 = vmatprep.subr.mxu0 0.0
      %1363 = vmatpush1.msra.mxu0 0.0
      %1364 = vmatprep.subr.mxu0 0.0
      %1365 = vmatpush1.msra.mxu0 0.0
      %1366 = vmatprep.subr.mxu0 0.0
      %1367 = vmatpush1.msra.mxu0 0.0
      %1368 = vmatprep.subr.mxu0 0.0
      %1369 = vmatpush1.msra.mxu0 0.0
      %1370 = vmatprep.subr.mxu0 0.0
      %1371 = vmatpush1.msra.mxu0 0.0
      %1372 = vmatprep.subr.mxu0 0.0
      %1373 = vmatpush1.msra.mxu0 0.0
      %1374 = vmatprep.subr.mxu0 0.0
      %1375 = vmatpush1.msra.mxu0 0.0
      %1376 = vmatprep.mubr.f32.mxu0 0.0
      %1377 = vmatmul.mubr.f32.gmra.mrb[0].mxu0 %v1292
      %v1378 = vpop.f32.mrb[0].mxu0
      %v1379 = vadd.f32 %v1258, %v1378
      %v1380 = vpop.f32.mrb[0].mxu0
      %1381 = vmatprep.mubr.f32.mxu0 0.0
      %1382 = vmatmul.mubr.f32.gmra.mrb[0].mxu0 %v1295
      %v1383 = vpop.f32.mrb[0].mxu0
      %v1384 = vadd.f32 %v1263, %v1383
      %v1385 = vpop.f32.mrb[0].mxu0
      %1386 = vmatprep.mubr.f32.mxu0 0.0
      %1387 = vmatmul.mubr.f32.gmra.mrb[0].mxu0 %v1298
      %v1388 = vpop.f32.mrb[0].mxu0
      %v1389 = vadd.f32 %v1268, %v1388
      %v1390 = vpop.f32.mrb[0].mxu0
      %1391 = vmatprep.mubr.f32.mxu0 0.0
      %1392 = vmatmul.mubr.f32.gmra.mrb[0].mxu0 %v1301
      %v1393 = vpop.f32.mrb[0].mxu0
      %v1394 = vadd.f32 %v1273, %v1393
      %v1395 = vpop.f32.mrb[0].mxu0
      %1396 = vmatprep.mubr.f32.mxu0 0.0
      %1397 = vmatmul.mubr.f32.gmra.mrb[0].mxu0 %v1304
      %v1398 = vpop.f32.mrb[0].mxu0
      %v1399 = vadd.f32 %v1278, %v1398
      %v1400 = vpop.f32.mrb[0].mxu0
      %1401 = vmatprep.mubr.f32.mxu0 0.0
      %1402 = vmatmul.mubr.f32.gmra.mrb[0].mxu0 %v1307
      %v1403 = vpop.f32.mrb[0].mxu0
      %v1404 = vadd.f32 %v1283, %v1403
      %v1405 = vpop.f32.mrb[0].mxu0
      %1406 = vmatprep.mubr.f32.mxu0 0.0
      %1407 = vmatmul.mubr.f32.gmra.mrb[0].mxu0 %v1310
      %v1408 = vpop.f32.mrb[0].mxu0
      %v1409 = vadd.f32 %v1288, %v1408
      %v1410 = vpop.f32.mrb[0].mxu0
      %1411 = vdwg.mxu0
      %v1412 = vld [vmem:[%s4] sm:$0x1]
      %v1414 = vlaneseq
      %v1415 = vshrl.u32 %v1414, 7
      %v1416 = vsub.s32 0, %v1415
      %v1417 = vrot.slane %v1412, %v1416
      %v1419 = vadd.f32 %v1379, %v1417
      %v1420 = vadd.f32 %v1384, %v1417
      %v1421 = vadd.f32 %v1389, %v1417
      %v1422 = vadd.f32 %v1394, %v1417
      %v1423 = vadd.f32 %v1399, %v1417
      %v1424 = vadd.f32 %v1404, %v1417
      %v1425 = vadd.f32 %v1409, %v1417
      %1426 = vst.msk [vmem:[%s251] sm:$0xff] %vm268, %v1419
      %1427 = vst.msk [vmem:[%s251 + $0x8] sm:$0xff] %vm268, %v1420
      %1428 = vst.msk [vmem:[%s251 + $0x10] sm:$0xff] %vm268, %v1421
      %1429 = vst.msk [vmem:[%s251 + $0x18] sm:$0xff] %vm268, %v1422
      %1430 = vst.msk [vmem:[%s251 + $0x20] sm:$0xff] %vm268, %v1423
      %1431 = vst.msk [vmem:[%s251 + $0x28] sm:$0xff] %vm268, %v1424
      %vm1432 = vcmask 122880
      %1433 = vst.msk [vmem:[%s251 + $0x30] sm:$0x1] %vm1432, %v1425
      %p1434 = scmp.lt.s32.totalorder %s17, 1
      %s1435 = scalar_select %p1434, %s17, 1
      %s1436 = smul.addr %s1435, 7
      %s1437 = smul.addr %s1436, 8
      %s1438 = scalar_lea.vmem %s6, %s1437
      // Predicated region
      $region45: #{mhsa_forward.1} parent=43 // pred_check
        %p1439 = pneg %p166
      $region46: #{mhsa_forward.1} parent=43 // pred_check_branch
        %1441 = sbr.rel (%p1439) target = $region48
      $region47: #{mhsa_forward.1} parent=43 // pred_region
        _
      $region48: #{mhsa_forward.1} parent=43 // pred_fallthru
        _
    $region44: #{mhsa_forward.1} parent=5 // pred_fallthru
      _
    %p1442 = scmp.le.s32.totalorder 2, %s12
    // Predicated region
    $region49: #{mhsa_forward.1} parent=5 // pred_check
      %p1443 = pneg %p1442
    $region50: #{mhsa_forward.1} parent=5 // pred_check_branch
      %1445 = sbr.rel (%p1443) target = $region52
    $region51: #{mhsa_forward.1} parent=5 // pred_region
      %s1446 = ssub.s32 %s12, 2
      // Predicated region
      $region53: #{mhsa_forward.1} parent=51 // pred_check
        %p1447 = pneg %p172
      $region54: #{mhsa_forward.1} parent=51 // pred_check_branch
        %1449 = sbr.rel (%p1447) target = $region56
      $region55: #{mhsa_forward.1} parent=51 // pred_region
        %p1450 = scmp.lt.s32.totalorder %s18, 1
        %s1451 = scalar_select %p1450, %s18, 1
        %s1452 = smul.addr %s1451, 7
        %s1453 = smul.addr %s1452, 8
        %s1454 = scalar_lea.vmem %s6, %s1453
      $region56: #{mhsa_forward.1} parent=51 // pred_fallthru
        _
    $region52: #{mhsa_forward.1} parent=5 // pred_fallthru
      _
  $region6: #{mhsa_forward.1} parent=0 // loop_footer
    %s16 = sadd.s32 1, %s12
  $region7: #{mhsa_forward.1} parent=0 // loop_footer_branch
    %11 = sbr.rel target = $region3
  $region8: #{mhsa_forward.1} parent=0 // loop_exit
    _

</llo_original>
